<compile_context>
chip_gen: v5e
topology: v5e:2x2
jax: 0.10.0
libtpu: 0.0.40
codegen_flags: <defaults>
</compile_context>

<pallas_src>
import jax
import jax.numpy as jnp
import numpy as np
from jax.experimental import pallas as pl
from jax.experimental.pallas import tpu as pltpu


_LANE = 128
_SUBLANE = 8
_VMEM_LIMIT_BYTES = 32 * 1024 * 1024   # explicit scoped-VMEM limit (safe on v5e/v6e/v7x)
_VMEM_BUDGET_BYTES = 24 * 1024 * 1024  # working-set budget, headroom inside the limit
_TINY_GATHER_ELEMS = 32768             # below this, plain XLA gather beats a kernel launch


def _round_up(x, m):
    return ((x + m - 1) // m) * m


def _props_embed_kernel(z_ref, col_ids_ref, table_ref, out_ref):
    """One grid step: gather TB atom rows as a one-hot @ table MXU matmul.

    z_ref       : (TB, 1)     int32  VMEM -- atomic numbers for this tile (column)
    col_ids_ref : (1, T_pad)  int32  VMEM -- constant 0..T_pad-1 row (hoisted iota)
    table_ref   : (T_pad, D)  float  VMEM -- type-padded property table (constant)
    out_ref     : (TB, D)     float  VMEM -- gathered rows, already in (N, D) layout
    """
    # one_hot[a, t] = (z[a] == t); exact 0/1 mask in the table dtype.
    one_hot = (z_ref[...] == col_ids_ref[...]).astype(table_ref.dtype)   # (TB, T_pad)

    # (TB, D) = (TB, T_pad) @ (T_pad, D).  HIGHEST precision keeps the gathered
    # rows bit-exact for f32 tables (each one-hot row selects exactly one row).
    gathered = jnp.dot(one_hot, table_ref[...],
                       preferred_element_type=jnp.float32,
                       precision=jax.lax.Precision.HIGHEST)
    out_ref[...] = gathered.astype(out_ref.dtype)
    # NOTE: for very small D a direct in-kernel lane gather (jnp.take on the
    # table ref) could drop the (TB, T_pad) one-hot entirely; the one-hot path
    # is kept as the portable / guaranteed lowering.


def _pick_block_atoms(n_atoms, d, t_pad, itemsize, requested):
    """Pick the atom tile so one grid step fits comfortably in scoped VMEM."""
    d_lanes = _round_up(max(d, 1), _LANE)          # lane-padded width of out / acc blocks
    # Constant blocks (double-buffered table + col-id row) come off the budget first.
    const_bytes = 2 * t_pad * d_lanes * itemsize + 2 * _SUBLANE * t_pad * 4
    budget = max(_VMEM_BUDGET_BYTES - const_bytes, 1 << 20)
    # Per-atom VMEM bytes of one grid step:
    #   2x double-buffered z column blocks (int32, lane-padded to 128)
    #   2x double-buffered output blocks   (lane-padded)
    #   one-hot (TB, T_pad) intermediate   (table dtype, >= f32 for the compare)
    #   f32 matmul accumulator             (lane-padded)
    per_atom = (2 * _LANE * 4
                + 2 * d_lanes * itemsize
                + t_pad * max(itemsize, 4)
                + d_lanes * 4)
    cap = max(budget // per_atom, _SUBLANE)

    if requested is None:
        blk = min(4096, cap)
    else:
        blk = min(int(requested), cap)
    blk = max(_SUBLANE, (blk // _SUBLANE) * _SUBLANE)

    # Small inputs collapse to a single grid step (no per-step pipeline overhead).
    if n_atoms <= blk:
        blk = max(_SUBLANE, _round_up(n_atoms, _SUBLANE))
    return blk


def _gather_pallas(z, table, col_ids, out_dtype, d, block_atoms):
    n_atoms = z.shape[0]
    t_pad = table.shape[0]
    itemsize = jnp.dtype(table.dtype).itemsize

    blk = _pick_block_atoms(n_atoms, d, t_pad, itemsize, block_atoms)
    n_pad = _round_up(n_atoms, blk)

    # Column-major indices (atoms on the sublane axis); padded rows use the
    # safe index 0 and are sliced off before returning.
    z_col = jnp.zeros((n_pad, 1), jnp.int32).at[:n_atoms, 0].set(z.astype(jnp.int32))

    grid = (n_pad // blk,)
    cost = pl.CostEstimate(
        flops=2 * n_pad * t_pad * d,
        transcendentals=0,
        bytes_accessed=(n_pad * 4 + t_pad * 4
                        + t_pad * d * itemsize
                        + n_pad * d * itemsize),
    )

    out = pl.pallas_call(
        _props_embed_kernel,
        out_shape=jax.ShapeDtypeStruct((n_pad, d), out_dtype),
        grid_spec=pltpu.PrefetchScalarGridSpec(
            num_scalar_prefetch=0,
            grid=grid,
            in_specs=[
                # per-tile indices, atoms on the sublane axis
                pl.BlockSpec((blk, 1), lambda i: (i, 0)),
                # constant column-id row (hoisted iota), never re-fetched
                pl.BlockSpec((1, t_pad), lambda i: (0, 0)),
                # full (tiny) type-padded table, constant block index
                pl.BlockSpec((t_pad, d), lambda i: (0, 0)),
            ],
            # (TB, D) blocks land straight in the (N_pad, D) output:
            # no wrapper-side transpose / extra HBM pass.
            out_specs=pl.BlockSpec((blk, d), lambda i: (i, 0)),
        ),
        compiler_params=pltpu.CompilerParams(
            dimension_semantics=("parallel",),
            vmem_limit_bytes=_VMEM_LIMIT_BYTES),
        cost_estimate=cost,
    )(z_col, col_ids, table)

    return out if n_pad == n_atoms else out[:n_atoms]


class PropertiesEmbedding:
    """JAX/Pallas equivalent of phast.embedding.PropertiesEmbedding.

    forward(z) == properties[z].  The `grad` flag only decides whether the
    table would be trainable; the forward pass is identical, so it is accepted
    and ignored here.

    Notes:
      * indices must satisfy 0 <= z < num_types; out-of-range / negative
        indices produce all-zero rows (not an error, unlike torch indexing).
      * the type-padded table and the column-id iota are built once at
        construction (like the torch buffer), not re-materialized per call.
    """

    def __init__(self, properties, grad: bool = False):
        del grad  # forward math is identical for parameter vs buffer
        self.properties = jnp.asarray(properties)
        if self.properties.ndim != 2:
            raise ValueError("properties must be a (num_types, D) table")
        self.num_types, self.d = self.properties.shape
        # Minimal 128-multiple type padding (going to 256 would only double the
        # one-hot build cost for zero MXU benefit).
        self.t_pad = max(_LANE, _round_up(self.num_types, _LANE))
        table = jnp.zeros((self.t_pad, self.d), self.properties.dtype)
        self.table = table.at[: self.num_types, :].set(self.properties)
        self.col_ids = jax.lax.broadcasted_iota(jnp.int32, (1, self.t_pad), 1)

    def __call__(self, z, *, block_atoms=None, force_pallas=False):
        z = jnp.asarray(z)
        if z.ndim != 1:
            raise ValueError("z must be a 1-D vector of atomic numbers")
        n_atoms = z.shape[0]
        if n_atoms == 0:
            return jnp.zeros((0, self.d), self.properties.dtype)
        # Tiny inputs: plain XLA gather beats wrapper padding + kernel launch.
        if not force_pallas and n_atoms * self.d < _TINY_GATHER_ELEMS:
            return jnp.take(self.properties, z.astype(jnp.int32), axis=0)
        return _gather_pallas(z, self.table, self.col_ids,
                              self.properties.dtype, self.d, block_atoms)

    def reset_parameters(self):
        pass


def properties_embedding(z, properties, *, block_atoms=None, force_pallas=False):
    """One-shot functional form (prefer PropertiesEmbedding, which caches the
    padded table across calls)."""
    return PropertiesEmbedding(properties)(z, block_atoms=block_atoms,
                                           force_pallas=force_pallas)


if __name__ == "__main__":
    key = jax.random.PRNGKey(0)
    k_props, k_z1, k_z2 = jax.random.split(key, 3)

    NUM_TYPES = 100   # e.g. atomic numbers 0..99 (row 0 unused / padding)
    D = 8             # physical properties per element

    # Deterministic synthetic "physical property" table (the torch buffer).
    properties = jax.random.normal(k_props, (NUM_TYPES, D), dtype=jnp.float32)
    emb = PropertiesEmbedding(properties, grad=False)

    # (a) Pallas path, single grid step (small input collapses to one tile).
    z1 = jax.random.randint(k_z1, (512,), 1, NUM_TYPES, dtype=jnp.int32)
    out1 = jax.block_until_ready(emb(z1, force_pallas=True))
    np.testing.assert_allclose(np.asarray(out1), np.asarray(properties[z1]),
                               rtol=0, atol=0)

    # (b) Pallas path, multi-step grid with padding (N not a tile multiple).
    z2 = jax.random.randint(k_z2, (300,), 1, NUM_TYPES, dtype=jnp.int32)
    out2 = jax.block_until_ready(emb(z2, block_atoms=128, force_pallas=True))
    np.testing.assert_allclose(np.asarray(out2), np.asarray(properties[z2]),
                               rtol=0, atol=0)

    # (c) tiny-input dispatch path (plain XLA gather, no kernel launch).
    out3 = jax.block_until_ready(emb(z2[:16]))
    np.testing.assert_allclose(np.asarray(out3), np.asarray(properties[z2[:16]]),
                               rtol=0, atol=0)

    print("KERNEL_OK")
</pallas_src>

<mosaic_0001>
module attributes {stable_mosaic.version = 11 : i64} {
  func.func @_props_embed_kernel(%arg0: i32, %arg1: memref<512x1xi32, #tpu.memory_space<vmem>>, %arg2: memref<1x128xi32, #tpu.memory_space<vmem>>, %arg3: memref<128x8xf32, #tpu.memory_space<vmem>>, %arg4: memref<512x8xf32, #tpu.memory_space<vmem>>) attributes {dimension_semantics = [#tpu.dimension_semantics<parallel>], iteration_bounds = array<i64: 1>, scalar_prefetch = 0 : i64, scratch_operands = 0 : i64, tpu.core_type = #tpu.core_type<tc>, window_params = [{transform_indices = @transform_0, window_bounds = array<i64: 512, 1>}, {pipeline_mode = #tpu.pipeline_mode<synchronous>, transform_indices = @transform_1, window_bounds = array<i64: 1, 128>}, {pipeline_mode = #tpu.pipeline_mode<synchronous>, transform_indices = @transform_2, window_bounds = array<i64: 128, 8>}, {transform_indices = @transform_3, window_bounds = array<i64: 512, 8>}]} {
    %c0 = arith.constant 0 : index
    %c0_0 = arith.constant 0 : index
    %0 = vector.load %arg1[%c0, %c0_0] : memref<512x1xi32, #tpu.memory_space<vmem>>, vector<512x1xi32>
    %c0_1 = arith.constant 0 : index
    %c0_2 = arith.constant 0 : index
    %1 = vector.load %arg2[%c0_1, %c0_2] : memref<1x128xi32, #tpu.memory_space<vmem>>, vector<1x128xi32>
    %2 = vector.broadcast %0 : vector<512x1xi32> to vector<512x128xi32>
    %3 = vector.broadcast %1 : vector<1x128xi32> to vector<512x128xi32>
    %4 = arith.cmpi eq, %2, %3 : vector<512x128xi32>
    %5 = arith.extui %4 : vector<512x128xi1> to vector<512x128xi32>
    %6 = arith.sitofp %5 : vector<512x128xi32> to vector<512x128xf32>
    %c0_3 = arith.constant 0 : index
    %c0_4 = arith.constant 0 : index
    %7 = vector.load %arg3[%c0_3, %c0_4] : memref<128x8xf32, #tpu.memory_space<vmem>>, vector<128x8xf32>
    %cst = arith.constant dense<0.000000e+00> : vector<512x8xf32>
    %8 = tpu.matmul %6, %7, %cst {dimension_numbers = #tpu.dot_dimension_numbers<[1], [0], [0], [1], [0, 0, 1, 1], [], []>, precision = #tpu.contract_precision<fp32>} : vector<512x128xf32>, vector<128x8xf32>, vector<512x8xf32> -> vector<512x8xf32>
    %c0_5 = arith.constant 0 : index
    %c0_6 = arith.constant 0 : index
    %9 = vector.load %arg4[%c0_5, %c0_6] : memref<512x8xf32, #tpu.memory_space<vmem>>, vector<512x8xf32>
    tpu.vector_store %arg4[%c0_5, %c0_6], %8 {strides = array<i32>} : memref<512x8xf32, #tpu.memory_space<vmem>>, vector<512x8xf32>,
    return
  }
  func.func @transform_0(%arg0: i32) -> (i32, i32) {
    %c0_i32 = arith.constant 0 : i32
    %c0_i32_0 = arith.constant 0 : i32
    return %arg0, %c0_i32 : i32, i32
  }
  func.func @transform_1(%arg0: i32) -> (i32, i32) {
    %c0_i32 = arith.constant 0 : i32
    %c0_i32_0 = arith.constant 0 : i32
    %c0_i32_1 = arith.constant 0 : i32
    return %c0_i32, %c0_i32_0 : i32, i32
  }
  func.func @transform_2(%arg0: i32) -> (i32, i32) {
    %c0_i32 = arith.constant 0 : i32
    %c0_i32_0 = arith.constant 0 : i32
    %c0_i32_1 = arith.constant 0 : i32
    return %c0_i32, %c0_i32_0 : i32, i32
  }
  func.func @transform_3(%arg0: i32) -> (i32, i32) {
    %c0_i32 = arith.constant 0 : i32
    %c0_i32_0 = arith.constant 0 : i32
    return %arg0, %c0_i32 : i32, i32
  }
}

</mosaic_0001>

<llo_original>
// kernel: tpu_custom_call.1
$region0: #{tpu_custom_call.1}
  #allocation0 [shape = 'u32[]', space=smem, size = 0x4, offset = 0x4, fixed_abs, tag = 'smem constant byte address 0x4 - core index']
  #allocation1 [shape = 'u32[72,128]{1,0:T(1,128)}', space=vmem, size = 0x9000, scoped, tag = 'internal scratch']
  %s0 = inlined_call_operand.vmem [shape: s32[512,1], index: 0, kind: input, shape index: {}]
  %s1 = inlined_call_operand.vmem [shape: s32[1,128], index: 1, kind: input, shape index: {}]
  %s2 = inlined_call_operand.vmem [shape: f32[128,8], index: 2, kind: input, shape index: {}]
  %s3 = inlined_call_operand.vmem [shape: f32[512,8], index: 3, kind: output, shape index: {}]
  %s4 = sld [smem:[#allocation0]]
  $region22: #{tpu_custom_call.1} parent=0
    _
  %s6 = ssub.s32 1, %s4
  %s7 = scalar_select 0, %s6, %s4
  // Predicated region
  $region2: #{tpu_custom_call.1} parent=0 // pred_check
    _
  $region3: #{tpu_custom_call.1} parent=0 // pred_check_branch
    %9 = sbr.rel (0) target = $region5
  $region4: #{tpu_custom_call.1} parent=0 // pred_region
    _
  $region5: #{tpu_custom_call.1} parent=0 // pred_fallthru
    _
  // Predicated region
  $region6: #{tpu_custom_call.1} parent=0 // pred_check
    _
  $region7: #{tpu_custom_call.1} parent=0 // pred_check_branch
    %11 = sbr.rel (0) target = $region9
  $region8: #{tpu_custom_call.1} parent=0 // pred_region
    _
  $region9: #{tpu_custom_call.1} parent=0 // pred_fallthru
    _
  // Predicated region
  $region10: #{tpu_custom_call.1} parent=0 // pred_check
    _
  $region11: #{tpu_custom_call.1} parent=0 // pred_check_branch
    %13 = sbr.rel (0) target = $region13
  $region12: #{tpu_custom_call.1} parent=0 // pred_region
    _
  $region13: #{tpu_custom_call.1} parent=0 // pred_fallthru
    _
  %v14 = vld [vmem:[%s0] sm:$0xff]
  %v15 = vld [vmem:[%s0 + $0x8] sm:$0xff]
  %v16 = vld [vmem:[%s0 + $0x10] sm:$0xff]
  %v17 = vld [vmem:[%s0 + $0x18] sm:$0xff]
  %v18 = vld [vmem:[%s0 + $0x20] sm:$0xff]
  %v19 = vld [vmem:[%s0 + $0x28] sm:$0xff]
  %v20 = vld [vmem:[%s0 + $0x30] sm:$0xff]
  %v21 = vld [vmem:[%s0 + $0x38] sm:$0xff]
  %v22 = vld [vmem:[%s0 + $0x40] sm:$0xff]
  %v23 = vld [vmem:[%s0 + $0x48] sm:$0xff]
  %v24 = vld [vmem:[%s0 + $0x50] sm:$0xff]
  %v25 = vld [vmem:[%s0 + $0x58] sm:$0xff]
  %v26 = vld [vmem:[%s0 + $0x60] sm:$0xff]
  %v27 = vld [vmem:[%s0 + $0x68] sm:$0xff]
  %v28 = vld [vmem:[%s0 + $0x70] sm:$0xff]
  %v29 = vld [vmem:[%s0 + $0x78] sm:$0xff]
  %v30 = vld [vmem:[%s0 + $0x80] sm:$0xff]
  %v31 = vld [vmem:[%s0 + $0x88] sm:$0xff]
  %v32 = vld [vmem:[%s0 + $0x90] sm:$0xff]
  %v33 = vld [vmem:[%s0 + $0x98] sm:$0xff]
  %v34 = vld [vmem:[%s0 + $0xa0] sm:$0xff]
  %v35 = vld [vmem:[%s0 + $0xa8] sm:$0xff]
  %v36 = vld [vmem:[%s0 + $0xb0] sm:$0xff]
  %v37 = vld [vmem:[%s0 + $0xb8] sm:$0xff]
  %v38 = vld [vmem:[%s0 + $0xc0] sm:$0xff]
  %v39 = vld [vmem:[%s0 + $0xc8] sm:$0xff]
  %v40 = vld [vmem:[%s0 + $0xd0] sm:$0xff]
  %v41 = vld [vmem:[%s0 + $0xd8] sm:$0xff]
  %v42 = vld [vmem:[%s0 + $0xe0] sm:$0xff]
  %v43 = vld [vmem:[%s0 + $0xe8] sm:$0xff]
  %v44 = vld [vmem:[%s0 + $0xf0] sm:$0xff]
  %v45 = vld [vmem:[%s0 + $0xf8] sm:$0xff]
  %v46 = vld [vmem:[%s0 + $0x100] sm:$0xff]
  %v47 = vld [vmem:[%s0 + $0x108] sm:$0xff]
  %v48 = vld [vmem:[%s0 + $0x110] sm:$0xff]
  %v49 = vld [vmem:[%s0 + $0x118] sm:$0xff]
  %v50 = vld [vmem:[%s0 + $0x120] sm:$0xff]
  %v51 = vld [vmem:[%s0 + $0x128] sm:$0xff]
  %v52 = vld [vmem:[%s0 + $0x130] sm:$0xff]
  %v53 = vld [vmem:[%s0 + $0x138] sm:$0xff]
  %v54 = vld [vmem:[%s0 + $0x140] sm:$0xff]
  %v55 = vld [vmem:[%s0 + $0x148] sm:$0xff]
  %v56 = vld [vmem:[%s0 + $0x150] sm:$0xff]
  %v57 = vld [vmem:[%s0 + $0x158] sm:$0xff]
  %v58 = vld [vmem:[%s0 + $0x160] sm:$0xff]
  %v59 = vld [vmem:[%s0 + $0x168] sm:$0xff]
  %v60 = vld [vmem:[%s0 + $0x170] sm:$0xff]
  %v61 = vld [vmem:[%s0 + $0x178] sm:$0xff]
  %v62 = vld [vmem:[%s0 + $0x180] sm:$0xff]
  %v63 = vld [vmem:[%s0 + $0x188] sm:$0xff]
  %v64 = vld [vmem:[%s0 + $0x190] sm:$0xff]
  %v65 = vld [vmem:[%s0 + $0x198] sm:$0xff]
  %v66 = vld [vmem:[%s0 + $0x1a0] sm:$0xff]
  %v67 = vld [vmem:[%s0 + $0x1a8] sm:$0xff]
  %v68 = vld [vmem:[%s0 + $0x1b0] sm:$0xff]
  %v69 = vld [vmem:[%s0 + $0x1b8] sm:$0xff]
  %v70 = vld [vmem:[%s0 + $0x1c0] sm:$0xff]
  %v71 = vld [vmem:[%s0 + $0x1c8] sm:$0xff]
  %v72 = vld [vmem:[%s0 + $0x1d0] sm:$0xff]
  %v73 = vld [vmem:[%s0 + $0x1d8] sm:$0xff]
  %v74 = vld [vmem:[%s0 + $0x1e0] sm:$0xff]
  %v75 = vld [vmem:[%s0 + $0x1e8] sm:$0xff]
  %v76 = vld [vmem:[%s0 + $0x1f0] sm:$0xff]
  %v77 = vld [vmem:[%s0 + $0x1f8] sm:$0xff]
  %v78 = vld [vmem:[%s1] sm:$0x1]
  %79 = vset.pattern.permute.xlu0 0
  %80 = vperm.xlu0 %79, %v14
  %v81 = vpop.permute.xlu0 %80
  %82 = vset.pattern.permute.xlu0 0
  %83 = vperm.xlu0 %82, %v15
  %v84 = vpop.permute.xlu0 %83
  %85 = vset.pattern.permute.xlu0 0
  %86 = vperm.xlu0 %85, %v16
  %v87 = vpop.permute.xlu0 %86
  %88 = vset.pattern.permute.xlu0 0
  %89 = vperm.xlu0 %88, %v17
  %v90 = vpop.permute.xlu0 %89
  %91 = vset.pattern.permute.xlu0 0
  %92 = vperm.xlu0 %91, %v18
  %v93 = vpop.permute.xlu0 %92
  %94 = vset.pattern.permute.xlu0 0
  %95 = vperm.xlu0 %94, %v19
  %v96 = vpop.permute.xlu0 %95
  %97 = vset.pattern.permute.xlu0 0
  %98 = vperm.xlu0 %97, %v20
  %v99 = vpop.permute.xlu0 %98
  %100 = vset.pattern.permute.xlu0 0
  %101 = vperm.xlu0 %100, %v21
  %v102 = vpop.permute.xlu0 %101
  %103 = vset.pattern.permute.xlu0 0
  %104 = vperm.xlu0 %103, %v22
  %v105 = vpop.permute.xlu0 %104
  %106 = vset.pattern.permute.xlu0 0
  %107 = vperm.xlu0 %106, %v23
  %v108 = vpop.permute.xlu0 %107
  %109 = vset.pattern.permute.xlu0 0
  %110 = vperm.xlu0 %109, %v24
  %v111 = vpop.permute.xlu0 %110
  %112 = vset.pattern.permute.xlu0 0
  %113 = vperm.xlu0 %112, %v25
  %v114 = vpop.permute.xlu0 %113
  %115 = vset.pattern.permute.xlu0 0
  %116 = vperm.xlu0 %115, %v26
  %v117 = vpop.permute.xlu0 %116
  %118 = vset.pattern.permute.xlu0 0
  %119 = vperm.xlu0 %118, %v27
  %v120 = vpop.permute.xlu0 %119
  %121 = vset.pattern.permute.xlu0 0
  %122 = vperm.xlu0 %121, %v28
  %v123 = vpop.permute.xlu0 %122
  %124 = vset.pattern.permute.xlu0 0
  %125 = vperm.xlu0 %124, %v29
  %v126 = vpop.permute.xlu0 %125
  %127 = vset.pattern.permute.xlu0 0
  %128 = vperm.xlu0 %127, %v30
  %v129 = vpop.permute.xlu0 %128
  %130 = vset.pattern.permute.xlu0 0
  %131 = vperm.xlu0 %130, %v31
  %v132 = vpop.permute.xlu0 %131
  %133 = vset.pattern.permute.xlu0 0
  %134 = vperm.xlu0 %133, %v32
  %v135 = vpop.permute.xlu0 %134
  %136 = vset.pattern.permute.xlu0 0
  %137 = vperm.xlu0 %136, %v33
  %v138 = vpop.permute.xlu0 %137
  %139 = vset.pattern.permute.xlu0 0
  %140 = vperm.xlu0 %139, %v34
  %v141 = vpop.permute.xlu0 %140
  %142 = vset.pattern.permute.xlu0 0
  %143 = vperm.xlu0 %142, %v35
  %v144 = vpop.permute.xlu0 %143
  %145 = vset.pattern.permute.xlu0 0
  %146 = vperm.xlu0 %145, %v36
  %v147 = vpop.permute.xlu0 %146
  %148 = vset.pattern.permute.xlu0 0
  %149 = vperm.xlu0 %148, %v37
  %v150 = vpop.permute.xlu0 %149
  %151 = vset.pattern.permute.xlu0 0
  %152 = vperm.xlu0 %151, %v38
  %v153 = vpop.permute.xlu0 %152
  %154 = vset.pattern.permute.xlu0 0
  %155 = vperm.xlu0 %154, %v39
  %v156 = vpop.permute.xlu0 %155
  %157 = vset.pattern.permute.xlu0 0
  %158 = vperm.xlu0 %157, %v40
  %v159 = vpop.permute.xlu0 %158
  %160 = vset.pattern.permute.xlu0 0
  %161 = vperm.xlu0 %160, %v41
  %v162 = vpop.permute.xlu0 %161
  %163 = vset.pattern.permute.xlu0 0
  %164 = vperm.xlu0 %163, %v42
  %v165 = vpop.permute.xlu0 %164
  %166 = vset.pattern.permute.xlu0 0
  %167 = vperm.xlu0 %166, %v43
  %v168 = vpop.permute.xlu0 %167
  %169 = vset.pattern.permute.xlu0 0
  %170 = vperm.xlu0 %169, %v44
  %v171 = vpop.permute.xlu0 %170
  %172 = vset.pattern.permute.xlu0 0
  %173 = vperm.xlu0 %172, %v45
  %v174 = vpop.permute.xlu0 %173
  %175 = vset.pattern.permute.xlu0 0
  %176 = vperm.xlu0 %175, %v46
  %v177 = vpop.permute.xlu0 %176
  %178 = vset.pattern.permute.xlu0 0
  %179 = vperm.xlu0 %178, %v47
  %v180 = vpop.permute.xlu0 %179
  %181 = vset.pattern.permute.xlu0 0
  %182 = vperm.xlu0 %181, %v48
  %v183 = vpop.permute.xlu0 %182
  %184 = vset.pattern.permute.xlu0 0
  %185 = vperm.xlu0 %184, %v49
  %v186 = vpop.permute.xlu0 %185
  %187 = vset.pattern.permute.xlu0 0
  %188 = vperm.xlu0 %187, %v50
  %v189 = vpop.permute.xlu0 %188
  %190 = vset.pattern.permute.xlu0 0
  %191 = vperm.xlu0 %190, %v51
  %v192 = vpop.permute.xlu0 %191
  %193 = vset.pattern.permute.xlu0 0
  %194 = vperm.xlu0 %193, %v52
  %v195 = vpop.permute.xlu0 %194
  %196 = vset.pattern.permute.xlu0 0
  %197 = vperm.xlu0 %196, %v53
  %v198 = vpop.permute.xlu0 %197
  %199 = vset.pattern.permute.xlu0 0
  %200 = vperm.xlu0 %199, %v54
  %v201 = vpop.permute.xlu0 %200
  %202 = vset.pattern.permute.xlu0 0
  %203 = vperm.xlu0 %202, %v55
  %v204 = vpop.permute.xlu0 %203
  %205 = vset.pattern.permute.xlu0 0
  %206 = vperm.xlu0 %205, %v56
  %v207 = vpop.permute.xlu0 %206
  %208 = vset.pattern.permute.xlu0 0
  %209 = vperm.xlu0 %208, %v57
  %v210 = vpop.permute.xlu0 %209
  %211 = vset.pattern.permute.xlu0 0
  %212 = vperm.xlu0 %211, %v58
  %v213 = vpop.permute.xlu0 %212
  %214 = vset.pattern.permute.xlu0 0
  %215 = vperm.xlu0 %214, %v59
  %v216 = vpop.permute.xlu0 %215
  %217 = vset.pattern.permute.xlu0 0
  %218 = vperm.xlu0 %217, %v60
  %v219 = vpop.permute.xlu0 %218
  %220 = vset.pattern.permute.xlu0 0
  %221 = vperm.xlu0 %220, %v61
  %v222 = vpop.permute.xlu0 %221
  %223 = vset.pattern.permute.xlu0 0
  %224 = vperm.xlu0 %223, %v62
  %v225 = vpop.permute.xlu0 %224
  %226 = vset.pattern.permute.xlu0 0
  %227 = vperm.xlu0 %226, %v63
  %v228 = vpop.permute.xlu0 %227
  %229 = vset.pattern.permute.xlu0 0
  %230 = vperm.xlu0 %229, %v64
  %v231 = vpop.permute.xlu0 %230
  %232 = vset.pattern.permute.xlu0 0
  %233 = vperm.xlu0 %232, %v65
  %v234 = vpop.permute.xlu0 %233
  %235 = vset.pattern.permute.xlu0 0
  %236 = vperm.xlu0 %235, %v66
  %v237 = vpop.permute.xlu0 %236
  %238 = vset.pattern.permute.xlu0 0
  %239 = vperm.xlu0 %238, %v67
  %v240 = vpop.permute.xlu0 %239
  %241 = vset.pattern.permute.xlu0 0
  %242 = vperm.xlu0 %241, %v68
  %v243 = vpop.permute.xlu0 %242
  %244 = vset.pattern.permute.xlu0 0
  %245 = vperm.xlu0 %244, %v69
  %v246 = vpop.permute.xlu0 %245
  %247 = vset.pattern.permute.xlu0 0
  %248 = vperm.xlu0 %247, %v70
  %v249 = vpop.permute.xlu0 %248
  %250 = vset.pattern.permute.xlu0 0
  %251 = vperm.xlu0 %250, %v71
  %v252 = vpop.permute.xlu0 %251
  %253 = vset.pattern.permute.xlu0 0
  %254 = vperm.xlu0 %253, %v72
  %v255 = vpop.permute.xlu0 %254
  %256 = vset.pattern.permute.xlu0 0
  %257 = vperm.xlu0 %256, %v73
  %v258 = vpop.permute.xlu0 %257
  %259 = vset.pattern.permute.xlu0 0
  %260 = vperm.xlu0 %259, %v74
  %v261 = vpop.permute.xlu0 %260
  %262 = vset.pattern.permute.xlu0 0
  %263 = vperm.xlu0 %262, %v75
  %v264 = vpop.permute.xlu0 %263
  %265 = vset.pattern.permute.xlu0 0
  %266 = vperm.xlu0 %265, %v76
  %v267 = vpop.permute.xlu0 %266
  %268 = vset.pattern.permute.xlu0 0
  %269 = vperm.xlu0 %268, %v77
  %v270 = vpop.permute.xlu0 %269
  %v271 = vperm.slane %v78, 0
  %vm272 = vcmp.eq.s32.totalorder %v81, %v271
  %vm273 = vcmp.eq.s32.totalorder %v84, %v271
  %vm274 = vcmp.eq.s32.totalorder %v87, %v271
  %vm275 = vcmp.eq.s32.totalorder %v90, %v271
  %vm276 = vcmp.eq.s32.totalorder %v93, %v271
  %vm277 = vcmp.eq.s32.totalorder %v96, %v271
  %vm278 = vcmp.eq.s32.totalorder %v99, %v271
  %vm279 = vcmp.eq.s32.totalorder %v102, %v271
  %vm280 = vcmp.eq.s32.totalorder %v105, %v271
  %vm281 = vcmp.eq.s32.totalorder %v108, %v271
  %vm282 = vcmp.eq.s32.totalorder %v111, %v271
  %vm283 = vcmp.eq.s32.totalorder %v114, %v271
  %vm284 = vcmp.eq.s32.totalorder %v117, %v271
  %vm285 = vcmp.eq.s32.totalorder %v120, %v271
  %vm286 = vcmp.eq.s32.totalorder %v123, %v271
  %vm287 = vcmp.eq.s32.totalorder %v126, %v271
  %vm288 = vcmp.eq.s32.totalorder %v129, %v271
  %vm289 = vcmp.eq.s32.totalorder %v132, %v271
  %vm290 = vcmp.eq.s32.totalorder %v135, %v271
  %vm291 = vcmp.eq.s32.totalorder %v138, %v271
  %vm292 = vcmp.eq.s32.totalorder %v141, %v271
  %vm293 = vcmp.eq.s32.totalorder %v144, %v271
  %vm294 = vcmp.eq.s32.totalorder %v147, %v271
  %vm295 = vcmp.eq.s32.totalorder %v150, %v271
  %vm296 = vcmp.eq.s32.totalorder %v153, %v271
  %vm297 = vcmp.eq.s32.totalorder %v156, %v271
  %vm298 = vcmp.eq.s32.totalorder %v159, %v271
  %vm299 = vcmp.eq.s32.totalorder %v162, %v271
  %vm300 = vcmp.eq.s32.totalorder %v165, %v271
  %vm301 = vcmp.eq.s32.totalorder %v168, %v271
  %vm302 = vcmp.eq.s32.totalorder %v171, %v271
  %vm303 = vcmp.eq.s32.totalorder %v174, %v271
  %vm304 = vcmp.eq.s32.totalorder %v177, %v271
  %vm305 = vcmp.eq.s32.totalorder %v180, %v271
  %vm306 = vcmp.eq.s32.totalorder %v183, %v271
  %vm307 = vcmp.eq.s32.totalorder %v186, %v271
  %vm308 = vcmp.eq.s32.totalorder %v189, %v271
  %vm309 = vcmp.eq.s32.totalorder %v192, %v271
  %vm310 = vcmp.eq.s32.totalorder %v195, %v271
  %vm311 = vcmp.eq.s32.totalorder %v198, %v271
  %vm312 = vcmp.eq.s32.totalorder %v201, %v271
  %vm313 = vcmp.eq.s32.totalorder %v204, %v271
  %vm314 = vcmp.eq.s32.totalorder %v207, %v271
  %vm315 = vcmp.eq.s32.totalorder %v210, %v271
  %vm316 = vcmp.eq.s32.totalorder %v213, %v271
  %vm317 = vcmp.eq.s32.totalorder %v216, %v271
  %vm318 = vcmp.eq.s32.totalorder %v219, %v271
  %vm319 = vcmp.eq.s32.totalorder %v222, %v271
  %vm320 = vcmp.eq.s32.totalorder %v225, %v271
  %vm321 = vcmp.eq.s32.totalorder %v228, %v271
  %vm322 = vcmp.eq.s32.totalorder %v231, %v271
  %vm323 = vcmp.eq.s32.totalorder %v234, %v271
  %vm324 = vcmp.eq.s32.totalorder %v237, %v271
  %vm325 = vcmp.eq.s32.totalorder %v240, %v271
  %vm326 = vcmp.eq.s32.totalorder %v243, %v271
  %vm327 = vcmp.eq.s32.totalorder %v246, %v271
  %vm328 = vcmp.eq.s32.totalorder %v249, %v271
  %vm329 = vcmp.eq.s32.totalorder %v252, %v271
  %vm330 = vcmp.eq.s32.totalorder %v255, %v271
  %vm331 = vcmp.eq.s32.totalorder %v258, %v271
  %vm332 = vcmp.eq.s32.totalorder %v261, %v271
  %vm333 = vcmp.eq.s32.totalorder %v264, %v271
  %vm334 = vcmp.eq.s32.totalorder %v267, %v271
  %vm335 = vcmp.eq.s32.totalorder %v270, %v271
  %v336 = vsel %vm272, 1, 0
  %v337 = vsel %vm273, 1, 0
  %v338 = vsel %vm274, 1, 0
  %v339 = vsel %vm275, 1, 0
  %v340 = vsel %vm276, 1, 0
  %v341 = vsel %vm277, 1, 0
  %v342 = vsel %vm278, 1, 0
  %v343 = vsel %vm279, 1, 0
  %v344 = vsel %vm280, 1, 0
  %v345 = vsel %vm281, 1, 0
  %v346 = vsel %vm282, 1, 0
  %v347 = vsel %vm283, 1, 0
  %v348 = vsel %vm284, 1, 0
  %v349 = vsel %vm285, 1, 0
  %v350 = vsel %vm286, 1, 0
  %v351 = vsel %vm287, 1, 0
  %v352 = vsel %vm288, 1, 0
  %v353 = vsel %vm289, 1, 0
  %v354 = vsel %vm290, 1, 0
  %v355 = vsel %vm291, 1, 0
  %v356 = vsel %vm292, 1, 0
  %v357 = vsel %vm293, 1, 0
  %v358 = vsel %vm294, 1, 0
  %v359 = vsel %vm295, 1, 0
  %v360 = vsel %vm296, 1, 0
  %v361 = vsel %vm297, 1, 0
  %v362 = vsel %vm298, 1, 0
  %v363 = vsel %vm299, 1, 0
  %v364 = vsel %vm300, 1, 0
  %v365 = vsel %vm301, 1, 0
  %v366 = vsel %vm302, 1, 0
  %v367 = vsel %vm303, 1, 0
  %v368 = vsel %vm304, 1, 0
  %v369 = vsel %vm305, 1, 0
  %v370 = vsel %vm306, 1, 0
  %v371 = vsel %vm307, 1, 0
  %v372 = vsel %vm308, 1, 0
  %v373 = vsel %vm309, 1, 0
  %v374 = vsel %vm310, 1, 0
  %v375 = vsel %vm311, 1, 0
  %v376 = vsel %vm312, 1, 0
  %v377 = vsel %vm313, 1, 0
  %v378 = vsel %vm314, 1, 0
  %v379 = vsel %vm315, 1, 0
  %v380 = vsel %vm316, 1, 0
  %v381 = vsel %vm317, 1, 0
  %v382 = vsel %vm318, 1, 0
  %v383 = vsel %vm319, 1, 0
  %v384 = vsel %vm320, 1, 0
  %v385 = vsel %vm321, 1, 0
  %v386 = vsel %vm322, 1, 0
  %v387 = vsel %vm323, 1, 0
  %v388 = vsel %vm324, 1, 0
  %v389 = vsel %vm325, 1, 0
  %v390 = vsel %vm326, 1, 0
  %v391 = vsel %vm327, 1, 0
  %v392 = vsel %vm328, 1, 0
  %v393 = vsel %vm329, 1, 0
  %v394 = vsel %vm330, 1, 0
  %v395 = vsel %vm331, 1, 0
  %v396 = vsel %vm332, 1, 0
  %v397 = vsel %vm333, 1, 0
  %v398 = vsel %vm334, 1, 0
  %v399 = vsel %vm335, 1, 0
  %v400 = vcvt.s32.f32 %v336
  %v401 = vcvt.s32.f32 %v337
  %v402 = vcvt.s32.f32 %v338
  %v403 = vcvt.s32.f32 %v339
  %v404 = vcvt.s32.f32 %v340
  %v405 = vcvt.s32.f32 %v341
  %v406 = vcvt.s32.f32 %v342
  %v407 = vcvt.s32.f32 %v343
  %v408 = vcvt.s32.f32 %v344
  %v409 = vcvt.s32.f32 %v345
  %v410 = vcvt.s32.f32 %v346
  %v411 = vcvt.s32.f32 %v347
  %v412 = vcvt.s32.f32 %v348
  %v413 = vcvt.s32.f32 %v349
  %v414 = vcvt.s32.f32 %v350
  %v415 = vcvt.s32.f32 %v351
  %v416 = vcvt.s32.f32 %v352
  %v417 = vcvt.s32.f32 %v353
  %v418 = vcvt.s32.f32 %v354
  %v419 = vcvt.s32.f32 %v355
  %v420 = vcvt.s32.f32 %v356
  %v421 = vcvt.s32.f32 %v357
  %v422 = vcvt.s32.f32 %v358
  %v423 = vcvt.s32.f32 %v359
  %v424 = vcvt.s32.f32 %v360
  %v425 = vcvt.s32.f32 %v361
  %v426 = vcvt.s32.f32 %v362
  %v427 = vcvt.s32.f32 %v363
  %v428 = vcvt.s32.f32 %v364
  %v429 = vcvt.s32.f32 %v365
  %v430 = vcvt.s32.f32 %v366
  %v431 = vcvt.s32.f32 %v367
  %v432 = vcvt.s32.f32 %v368
  %v433 = vcvt.s32.f32 %v369
  %v434 = vcvt.s32.f32 %v370
  %v435 = vcvt.s32.f32 %v371
  %v436 = vcvt.s32.f32 %v372
  %v437 = vcvt.s32.f32 %v373
  %v438 = vcvt.s32.f32 %v374
  %v439 = vcvt.s32.f32 %v375
  %v440 = vcvt.s32.f32 %v376
  %v441 = vcvt.s32.f32 %v377
  %v442 = vcvt.s32.f32 %v378
  %v443 = vcvt.s32.f32 %v379
  %v444 = vcvt.s32.f32 %v380
  %v445 = vcvt.s32.f32 %v381
  %v446 = vcvt.s32.f32 %v382
  %v447 = vcvt.s32.f32 %v383
  %v448 = vcvt.s32.f32 %v384
  %v449 = vcvt.s32.f32 %v385
  %v450 = vcvt.s32.f32 %v386
  %v451 = vcvt.s32.f32 %v387
  %v452 = vcvt.s32.f32 %v388
  %v453 = vcvt.s32.f32 %v389
  %v454 = vcvt.s32.f32 %v390
  %v455 = vcvt.s32.f32 %v391
  %v456 = vcvt.s32.f32 %v392
  %v457 = vcvt.s32.f32 %v393
  %v458 = vcvt.s32.f32 %v394
  %v459 = vcvt.s32.f32 %v395
  %v460 = vcvt.s32.f32 %v396
  %v461 = vcvt.s32.f32 %v397
  %v462 = vcvt.s32.f32 %v398
  %v463 = vcvt.s32.f32 %v399
  %v464 = vld [vmem:[%s2] sm:$0xff]
  %v465 = vld [vmem:[%s2 + $0x8] sm:$0xff]
  %v466 = vld [vmem:[%s2 + $0x10] sm:$0xff]
  %v467 = vld [vmem:[%s2 + $0x18] sm:$0xff]
  %v468 = vld [vmem:[%s2 + $0x20] sm:$0xff]
  %v469 = vld [vmem:[%s2 + $0x28] sm:$0xff]
  %v470 = vld [vmem:[%s2 + $0x30] sm:$0xff]
  %v471 = vld [vmem:[%s2 + $0x38] sm:$0xff]
  %v472 = vld [vmem:[%s2 + $0x40] sm:$0xff]
  %v473 = vld [vmem:[%s2 + $0x48] sm:$0xff]
  %v474 = vld [vmem:[%s2 + $0x50] sm:$0xff]
  %v475 = vld [vmem:[%s2 + $0x58] sm:$0xff]
  %v476 = vld [vmem:[%s2 + $0x60] sm:$0xff]
  %v477 = vld [vmem:[%s2 + $0x68] sm:$0xff]
  %v478 = vld [vmem:[%s2 + $0x70] sm:$0xff]
  %v479 = vld [vmem:[%s2 + $0x78] sm:$0xff]
  %v480 = vand.u32 %v479, 4294901760
  %481 = vmatpush.msra.mxu0 %v480
  %v482 = vand.u32 %v478, 4294901760
  %483 = vmatpush.msra.mxu0 %v482
  %v484 = vand.u32 %v477, 4294901760
  %485 = vmatpush.msra.mxu0 %v484
  %v486 = vand.u32 %v476, 4294901760
  %487 = vmatpush.msra.mxu0 %v486
  %v488 = vand.u32 %v475, 4294901760
  %489 = vmatpush.msra.mxu0 %v488
  %v490 = vand.u32 %v474, 4294901760
  %491 = vmatpush.msra.mxu0 %v490
  %v492 = vand.u32 %v473, 4294901760
  %493 = vmatpush.msra.mxu0 %v492
  %v494 = vand.u32 %v472, 4294901760
  %495 = vmatpush.msra.mxu0 %v494
  %v496 = vand.u32 %v471, 4294901760
  %497 = vmatpush.msra.mxu0 %v496
  %v498 = vand.u32 %v470, 4294901760
  %499 = vmatpush.msra.mxu0 %v498
  %v500 = vand.u32 %v469, 4294901760
  %501 = vmatpush.msra.mxu0 %v500
  %v502 = vand.u32 %v468, 4294901760
  %503 = vmatpush.msra.mxu0 %v502
  %v504 = vand.u32 %v467, 4294901760
  %505 = vmatpush.msra.mxu0 %v504
  %v506 = vand.u32 %v466, 4294901760
  %507 = vmatpush.msra.mxu0 %v506
  %v508 = vand.u32 %v465, 4294901760
  %509 = vmatpush.msra.mxu0 %v508
  %v510 = vand.u32 %v464, 4294901760
  %511 = vmatpush.msra.mxu0 %v510
  %v512 = vand.u32 %v400, 4294901760
  %v513 = vsub.f32 %v400, %v512
  %v514 = vand.u32 %v513, 4294901760
  %v515 = vsub.f32 %v513, %v514
  %v516 = vand.u32 %v515, 4294901760
  %517 = vmatmul.f32.gmra.mxu0 %v516
  %v518 = vpop.f32.mrf.mxu0
  %v519 = vadd.f32 0.0, %v518
  %v520 = vand.u32 %v401, 4294901760
  %v521 = vsub.f32 %v401, %v520
  %v522 = vand.u32 %v521, 4294901760
  %v523 = vsub.f32 %v521, %v522
  %v524 = vand.u32 %v523, 4294901760
  %525 = vmatmul.f32.gmra.mxu0 %v524
  %v526 = vpop.f32.mrf.mxu0
  %v527 = vadd.f32 0.0, %v526
  %v528 = vand.u32 %v402, 4294901760
  %v529 = vsub.f32 %v402, %v528
  %v530 = vand.u32 %v529, 4294901760
  %v531 = vsub.f32 %v529, %v530
  %v532 = vand.u32 %v531, 4294901760
  %533 = vmatmul.f32.gmra.mxu0 %v532
  %v534 = vpop.f32.mrf.mxu0
  %v535 = vadd.f32 0.0, %v534
  %v536 = vand.u32 %v403, 4294901760
  %v537 = vsub.f32 %v403, %v536
  %v538 = vand.u32 %v537, 4294901760
  %v539 = vsub.f32 %v537, %v538
  %v540 = vand.u32 %v539, 4294901760
  %541 = vmatmul.f32.gmra.mxu0 %v540
  %v542 = vpop.f32.mrf.mxu0
  %v543 = vadd.f32 0.0, %v542
  %v544 = vand.u32 %v404, 4294901760
  %v545 = vsub.f32 %v404, %v544
  %v546 = vand.u32 %v545, 4294901760
  %v547 = vsub.f32 %v545, %v546
  %v548 = vand.u32 %v547, 4294901760
  %549 = vmatmul.f32.gmra.mxu0 %v548
  %v550 = vpop.f32.mrf.mxu0
  %v551 = vadd.f32 0.0, %v550
  %v552 = vand.u32 %v405, 4294901760
  %v553 = vsub.f32 %v405, %v552
  %v554 = vand.u32 %v553, 4294901760
  %v555 = vsub.f32 %v553, %v554
  %v556 = vand.u32 %v555, 4294901760
  %557 = vmatmul.f32.gmra.mxu0 %v556
  %v558 = vpop.f32.mrf.mxu0
  %v559 = vadd.f32 0.0, %v558
  %v560 = vand.u32 %v406, 4294901760
  %v561 = vsub.f32 %v406, %v560
  %v562 = vand.u32 %v561, 4294901760
  %v563 = vsub.f32 %v561, %v562
  %v564 = vand.u32 %v563, 4294901760
  %565 = vmatmul.f32.gmra.mxu0 %v564
  %v566 = vpop.f32.mrf.mxu0
  %v567 = vadd.f32 0.0, %v566
  %v568 = vand.u32 %v407, 4294901760
  %v569 = vsub.f32 %v407, %v568
  %v570 = vand.u32 %v569, 4294901760
  %v571 = vsub.f32 %v569, %v570
  %v572 = vand.u32 %v571, 4294901760
  %573 = vmatmul.f32.gmra.mxu0 %v572
  %v574 = vpop.f32.mrf.mxu0
  %v575 = vadd.f32 0.0, %v574
  %v576 = vand.u32 %v408, 4294901760
  %v577 = vsub.f32 %v408, %v576
  %v578 = vand.u32 %v577, 4294901760
  %v579 = vsub.f32 %v577, %v578
  %v580 = vand.u32 %v579, 4294901760
  %581 = vmatmul.f32.gmra.mxu0 %v580
  %v582 = vpop.f32.mrf.mxu0
  %v583 = vadd.f32 0.0, %v582
  %v584 = vand.u32 %v409, 4294901760
  %v585 = vsub.f32 %v409, %v584
  %v586 = vand.u32 %v585, 4294901760
  %v587 = vsub.f32 %v585, %v586
  %v588 = vand.u32 %v587, 4294901760
  %589 = vmatmul.f32.gmra.mxu0 %v588
  %v590 = vpop.f32.mrf.mxu0
  %v591 = vadd.f32 0.0, %v590
  %v592 = vand.u32 %v410, 4294901760
  %v593 = vsub.f32 %v410, %v592
  %v594 = vand.u32 %v593, 4294901760
  %v595 = vsub.f32 %v593, %v594
  %v596 = vand.u32 %v595, 4294901760
  %597 = vmatmul.f32.gmra.mxu0 %v596
  %v598 = vpop.f32.mrf.mxu0
  %v599 = vadd.f32 0.0, %v598
  %v600 = vand.u32 %v411, 4294901760
  %v601 = vsub.f32 %v411, %v600
  %v602 = vand.u32 %v601, 4294901760
  %v603 = vsub.f32 %v601, %v602
  %v604 = vand.u32 %v603, 4294901760
  %605 = vmatmul.f32.gmra.mxu0 %v604
  %v606 = vpop.f32.mrf.mxu0
  %v607 = vadd.f32 0.0, %v606
  %v608 = vand.u32 %v412, 4294901760
  %v609 = vsub.f32 %v412, %v608
  %v610 = vand.u32 %v609, 4294901760
  %v611 = vsub.f32 %v609, %v610
  %v612 = vand.u32 %v611, 4294901760
  %613 = vmatmul.f32.gmra.mxu0 %v612
  %v614 = vpop.f32.mrf.mxu0
  %v615 = vadd.f32 0.0, %v614
  %v616 = vand.u32 %v413, 4294901760
  %v617 = vsub.f32 %v413, %v616
  %v618 = vand.u32 %v617, 4294901760
  %v619 = vsub.f32 %v617, %v618
  %v620 = vand.u32 %v619, 4294901760
  %621 = vmatmul.f32.gmra.mxu0 %v620
  %v622 = vpop.f32.mrf.mxu0
  %v623 = vadd.f32 0.0, %v622
  %v624 = vand.u32 %v414, 4294901760
  %v625 = vsub.f32 %v414, %v624
  %v626 = vand.u32 %v625, 4294901760
  %v627 = vsub.f32 %v625, %v626
  %v628 = vand.u32 %v627, 4294901760
  %629 = vmatmul.f32.gmra.mxu0 %v628
  %v630 = vpop.f32.mrf.mxu0
  %v631 = vadd.f32 0.0, %v630
  %v632 = vand.u32 %v415, 4294901760
  %v633 = vsub.f32 %v415, %v632
  %v634 = vand.u32 %v633, 4294901760
  %v635 = vsub.f32 %v633, %v634
  %v636 = vand.u32 %v635, 4294901760
  %637 = vmatmul.f32.gmra.mxu0 %v636
  %v638 = vpop.f32.mrf.mxu0
  %v639 = vadd.f32 0.0, %v638
  %v640 = vand.u32 %v416, 4294901760
  %v641 = vsub.f32 %v416, %v640
  %v642 = vand.u32 %v641, 4294901760
  %v643 = vsub.f32 %v641, %v642
  %v644 = vand.u32 %v643, 4294901760
  %645 = vmatmul.f32.gmra.mxu0 %v644
  %v646 = vpop.f32.mrf.mxu0
  %v647 = vadd.f32 0.0, %v646
  %v648 = vand.u32 %v417, 4294901760
  %v649 = vsub.f32 %v417, %v648
  %v650 = vand.u32 %v649, 4294901760
  %v651 = vsub.f32 %v649, %v650
  %v652 = vand.u32 %v651, 4294901760
  %653 = vmatmul.f32.gmra.mxu0 %v652
  %v654 = vpop.f32.mrf.mxu0
  %v655 = vadd.f32 0.0, %v654
  %v656 = vand.u32 %v418, 4294901760
  %v657 = vsub.f32 %v418, %v656
  %v658 = vand.u32 %v657, 4294901760
  %v659 = vsub.f32 %v657, %v658
  %v660 = vand.u32 %v659, 4294901760
  %661 = vmatmul.f32.gmra.mxu0 %v660
  %v662 = vpop.f32.mrf.mxu0
  %v663 = vadd.f32 0.0, %v662
  %v664 = vand.u32 %v419, 4294901760
  %v665 = vsub.f32 %v419, %v664
  %v666 = vand.u32 %v665, 4294901760
  %v667 = vsub.f32 %v665, %v666
  %v668 = vand.u32 %v667, 4294901760
  %669 = vmatmul.f32.gmra.mxu0 %v668
  %v670 = vpop.f32.mrf.mxu0
  %v671 = vadd.f32 0.0, %v670
  %v672 = vand.u32 %v420, 4294901760
  %v673 = vsub.f32 %v420, %v672
  %v674 = vand.u32 %v673, 4294901760
  %v675 = vsub.f32 %v673, %v674
  %v676 = vand.u32 %v675, 4294901760
  %677 = vmatmul.f32.gmra.mxu0 %v676
  %v678 = vpop.f32.mrf.mxu0
  %v679 = vadd.f32 0.0, %v678
  %v680 = vand.u32 %v421, 4294901760
  %v681 = vsub.f32 %v421, %v680
  %v682 = vand.u32 %v681, 4294901760
  %v683 = vsub.f32 %v681, %v682
  %v684 = vand.u32 %v683, 4294901760
  %685 = vmatmul.f32.gmra.mxu0 %v684
  %v686 = vpop.f32.mrf.mxu0
  %v687 = vadd.f32 0.0, %v686
  %v688 = vand.u32 %v422, 4294901760
  %v689 = vsub.f32 %v422, %v688
  %v690 = vand.u32 %v689, 4294901760
  %v691 = vsub.f32 %v689, %v690
  %v692 = vand.u32 %v691, 4294901760
  %693 = vmatmul.f32.gmra.mxu0 %v692
  %v694 = vpop.f32.mrf.mxu0
  %v695 = vadd.f32 0.0, %v694
  %v696 = vand.u32 %v423, 4294901760
  %v697 = vsub.f32 %v423, %v696
  %v698 = vand.u32 %v697, 4294901760
  %v699 = vsub.f32 %v697, %v698
  %v700 = vand.u32 %v699, 4294901760
  %701 = vmatmul.f32.gmra.mxu0 %v700
  %v702 = vpop.f32.mrf.mxu0
  %v703 = vadd.f32 0.0, %v702
  %v704 = vand.u32 %v424, 4294901760
  %v705 = vsub.f32 %v424, %v704
  %v706 = vand.u32 %v705, 4294901760
  %v707 = vsub.f32 %v705, %v706
  %v708 = vand.u32 %v707, 4294901760
  %709 = vmatmul.f32.gmra.mxu0 %v708
  %v710 = vpop.f32.mrf.mxu0
  %v711 = vadd.f32 0.0, %v710
  %v712 = vand.u32 %v425, 4294901760
  %v713 = vsub.f32 %v425, %v712
  %v714 = vand.u32 %v713, 4294901760
  %v715 = vsub.f32 %v713, %v714
  %v716 = vand.u32 %v715, 4294901760
  %717 = vmatmul.f32.gmra.mxu0 %v716
  %v718 = vpop.f32.mrf.mxu0
  %v719 = vadd.f32 0.0, %v718
  %v720 = vand.u32 %v426, 4294901760
  %v721 = vsub.f32 %v426, %v720
  %v722 = vand.u32 %v721, 4294901760
  %v723 = vsub.f32 %v721, %v722
  %v724 = vand.u32 %v723, 4294901760
  %725 = vmatmul.f32.gmra.mxu0 %v724
  %v726 = vpop.f32.mrf.mxu0
  %v727 = vadd.f32 0.0, %v726
  %v728 = vand.u32 %v427, 4294901760
  %v729 = vsub.f32 %v427, %v728
  %v730 = vand.u32 %v729, 4294901760
  %v731 = vsub.f32 %v729, %v730
  %v732 = vand.u32 %v731, 4294901760
  %733 = vmatmul.f32.gmra.mxu0 %v732
  %v734 = vpop.f32.mrf.mxu0
  %v735 = vadd.f32 0.0, %v734
  %v736 = vand.u32 %v428, 4294901760
  %v737 = vsub.f32 %v428, %v736
  %v738 = vand.u32 %v737, 4294901760
  %v739 = vsub.f32 %v737, %v738
  %v740 = vand.u32 %v739, 4294901760
  %741 = vmatmul.f32.gmra.mxu0 %v740
  %v742 = vpop.f32.mrf.mxu0
  %v743 = vadd.f32 0.0, %v742
  %v744 = vand.u32 %v429, 4294901760
  %v745 = vsub.f32 %v429, %v744
  %v746 = vand.u32 %v745, 4294901760
  %v747 = vsub.f32 %v745, %v746
  %v748 = vand.u32 %v747, 4294901760
  %749 = vmatmul.f32.gmra.mxu0 %v748
  %v750 = vpop.f32.mrf.mxu0
  %v751 = vadd.f32 0.0, %v750
  %v752 = vand.u32 %v430, 4294901760
  %v753 = vsub.f32 %v430, %v752
  %v754 = vand.u32 %v753, 4294901760
  %v755 = vsub.f32 %v753, %v754
  %v756 = vand.u32 %v755, 4294901760
  %757 = vmatmul.f32.gmra.mxu0 %v756
  %v758 = vpop.f32.mrf.mxu0
  %v759 = vadd.f32 0.0, %v758
  %v760 = vand.u32 %v431, 4294901760
  %v761 = vsub.f32 %v431, %v760
  %v762 = vand.u32 %v761, 4294901760
  %v763 = vsub.f32 %v761, %v762
  %v764 = vand.u32 %v763, 4294901760
  %765 = vmatmul.f32.gmra.mxu0 %v764
  %v766 = vpop.f32.mrf.mxu0
  %v767 = vadd.f32 0.0, %v766
  %v768 = vand.u32 %v432, 4294901760
  %v769 = vsub.f32 %v432, %v768
  %v770 = vand.u32 %v769, 4294901760
  %v771 = vsub.f32 %v769, %v770
  %v772 = vand.u32 %v771, 4294901760
  %773 = vmatmul.f32.gmra.mxu0 %v772
  %v774 = vpop.f32.mrf.mxu0
  %v775 = vadd.f32 0.0, %v774
  %v776 = vand.u32 %v433, 4294901760
  %v777 = vsub.f32 %v433, %v776
  %v778 = vand.u32 %v777, 4294901760
  %v779 = vsub.f32 %v777, %v778
  %v780 = vand.u32 %v779, 4294901760
  %781 = vmatmul.f32.gmra.mxu0 %v780
  %v782 = vpop.f32.mrf.mxu0
  %v783 = vadd.f32 0.0, %v782
  %v784 = vand.u32 %v434, 4294901760
  %v785 = vsub.f32 %v434, %v784
  %v786 = vand.u32 %v785, 4294901760
  %v787 = vsub.f32 %v785, %v786
  %v788 = vand.u32 %v787, 4294901760
  %789 = vmatmul.f32.gmra.mxu0 %v788
  %v790 = vpop.f32.mrf.mxu0
  %v791 = vadd.f32 0.0, %v790
  %v792 = vand.u32 %v435, 4294901760
  %v793 = vsub.f32 %v435, %v792
  %v794 = vand.u32 %v793, 4294901760
  %v795 = vsub.f32 %v793, %v794
  %v796 = vand.u32 %v795, 4294901760
  %797 = vmatmul.f32.gmra.mxu0 %v796
  %v798 = vpop.f32.mrf.mxu0
  %v799 = vadd.f32 0.0, %v798
  %v800 = vand.u32 %v436, 4294901760
  %v801 = vsub.f32 %v436, %v800
  %v802 = vand.u32 %v801, 4294901760
  %v803 = vsub.f32 %v801, %v802
  %v804 = vand.u32 %v803, 4294901760
  %805 = vmatmul.f32.gmra.mxu0 %v804
  %v806 = vpop.f32.mrf.mxu0
  %v807 = vadd.f32 0.0, %v806
  %v808 = vand.u32 %v437, 4294901760
  %v809 = vsub.f32 %v437, %v808
  %v810 = vand.u32 %v809, 4294901760
  %v811 = vsub.f32 %v809, %v810
  %v812 = vand.u32 %v811, 4294901760
  %813 = vmatmul.f32.gmra.mxu0 %v812
  %v814 = vpop.f32.mrf.mxu0
  %v815 = vadd.f32 0.0, %v814
  %v816 = vand.u32 %v438, 4294901760
  %v817 = vsub.f32 %v438, %v816
  %v818 = vand.u32 %v817, 4294901760
  %v819 = vsub.f32 %v817, %v818
  %v820 = vand.u32 %v819, 4294901760
  %821 = vmatmul.f32.gmra.mxu0 %v820
  %v822 = vpop.f32.mrf.mxu0
  %v823 = vadd.f32 0.0, %v822
  %v824 = vand.u32 %v439, 4294901760
  %v825 = vsub.f32 %v439, %v824
  %v826 = vand.u32 %v825, 4294901760
  %v827 = vsub.f32 %v825, %v826
  %v828 = vand.u32 %v827, 4294901760
  %829 = vmatmul.f32.gmra.mxu0 %v828
  %v830 = vpop.f32.mrf.mxu0
  %v831 = vadd.f32 0.0, %v830
  %v832 = vand.u32 %v440, 4294901760
  %v833 = vsub.f32 %v440, %v832
  %v834 = vand.u32 %v833, 4294901760
  %v835 = vsub.f32 %v833, %v834
  %v836 = vand.u32 %v835, 4294901760
  %837 = vmatmul.f32.gmra.mxu0 %v836
  %v838 = vpop.f32.mrf.mxu0
  %v839 = vadd.f32 0.0, %v838
  %v840 = vand.u32 %v441, 4294901760
  %v841 = vsub.f32 %v441, %v840
  %v842 = vand.u32 %v841, 4294901760
  %v843 = vsub.f32 %v841, %v842
  %v844 = vand.u32 %v843, 4294901760
  %845 = vmatmul.f32.gmra.mxu0 %v844
  %v846 = vpop.f32.mrf.mxu0
  %v847 = vadd.f32 0.0, %v846
  %v848 = vand.u32 %v442, 4294901760
  %v849 = vsub.f32 %v442, %v848
  %v850 = vand.u32 %v849, 4294901760
  %v851 = vsub.f32 %v849, %v850
  %v852 = vand.u32 %v851, 4294901760
  %853 = vmatmul.f32.gmra.mxu0 %v852
  %v854 = vpop.f32.mrf.mxu0
  %v855 = vadd.f32 0.0, %v854
  %v856 = vand.u32 %v443, 4294901760
  %v857 = vsub.f32 %v443, %v856
  %v858 = vand.u32 %v857, 4294901760
  %v859 = vsub.f32 %v857, %v858
  %v860 = vand.u32 %v859, 4294901760
  %861 = vmatmul.f32.gmra.mxu0 %v860
  %v862 = vpop.f32.mrf.mxu0
  %v863 = vadd.f32 0.0, %v862
  %v864 = vand.u32 %v444, 4294901760
  %v865 = vsub.f32 %v444, %v864
  %v866 = vand.u32 %v865, 4294901760
  %v867 = vsub.f32 %v865, %v866
  %v868 = vand.u32 %v867, 4294901760
  %869 = vmatmul.f32.gmra.mxu0 %v868
  %v870 = vpop.f32.mrf.mxu0
  %v871 = vadd.f32 0.0, %v870
  %v872 = vand.u32 %v445, 4294901760
  %v873 = vsub.f32 %v445, %v872
  %v874 = vand.u32 %v873, 4294901760
  %v875 = vsub.f32 %v873, %v874
  %v876 = vand.u32 %v875, 4294901760
  %877 = vmatmul.f32.gmra.mxu0 %v876
  %v878 = vpop.f32.mrf.mxu0
  %v879 = vadd.f32 0.0, %v878
  %v880 = vand.u32 %v446, 4294901760
  %v881 = vsub.f32 %v446, %v880
  %v882 = vand.u32 %v881, 4294901760
  %v883 = vsub.f32 %v881, %v882
  %v884 = vand.u32 %v883, 4294901760
  %885 = vmatmul.f32.gmra.mxu0 %v884
  %v886 = vpop.f32.mrf.mxu0
  %v887 = vadd.f32 0.0, %v886
  %v888 = vand.u32 %v447, 4294901760
  %v889 = vsub.f32 %v447, %v888
  %v890 = vand.u32 %v889, 4294901760
  %v891 = vsub.f32 %v889, %v890
  %v892 = vand.u32 %v891, 4294901760
  %893 = vmatmul.f32.gmra.mxu0 %v892
  %v894 = vpop.f32.mrf.mxu0
  %v895 = vadd.f32 0.0, %v894
  %v896 = vand.u32 %v448, 4294901760
  %v897 = vsub.f32 %v448, %v896
  %v898 = vand.u32 %v897, 4294901760
  %v899 = vsub.f32 %v897, %v898
  %v900 = vand.u32 %v899, 4294901760
  %901 = vmatmul.f32.gmra.mxu0 %v900
  %v902 = vpop.f32.mrf.mxu0
  %v903 = vadd.f32 0.0, %v902
  %v904 = vand.u32 %v449, 4294901760
  %v905 = vsub.f32 %v449, %v904
  %v906 = vand.u32 %v905, 4294901760
  %v907 = vsub.f32 %v905, %v906
  %v908 = vand.u32 %v907, 4294901760
  %909 = vmatmul.f32.gmra.mxu0 %v908
  %v910 = vpop.f32.mrf.mxu0
  %v911 = vadd.f32 0.0, %v910
  %v912 = vand.u32 %v450, 4294901760
  %v913 = vsub.f32 %v450, %v912
  %v914 = vand.u32 %v913, 4294901760
  %v915 = vsub.f32 %v913, %v914
  %v916 = vand.u32 %v915, 4294901760
  %917 = vmatmul.f32.gmra.mxu0 %v916
  %v918 = vpop.f32.mrf.mxu0
  %v919 = vadd.f32 0.0, %v918
  %v920 = vand.u32 %v451, 4294901760
  %v921 = vsub.f32 %v451, %v920
  %v922 = vand.u32 %v921, 4294901760
  %v923 = vsub.f32 %v921, %v922
  %v924 = vand.u32 %v923, 4294901760
  %925 = vmatmul.f32.gmra.mxu0 %v924
  %v926 = vpop.f32.mrf.mxu0
  %v927 = vadd.f32 0.0, %v926
  %v928 = vand.u32 %v452, 4294901760
  %v929 = vsub.f32 %v452, %v928
  %v930 = vand.u32 %v929, 4294901760
  %v931 = vsub.f32 %v929, %v930
  %v932 = vand.u32 %v931, 4294901760
  %933 = vmatmul.f32.gmra.mxu0 %v932
  %v934 = vpop.f32.mrf.mxu0
  %v935 = vadd.f32 0.0, %v934
  %v936 = vand.u32 %v453, 4294901760
  %v937 = vsub.f32 %v453, %v936
  %v938 = vand.u32 %v937, 4294901760
  %v939 = vsub.f32 %v937, %v938
  %v940 = vand.u32 %v939, 4294901760
  %941 = vmatmul.f32.gmra.mxu0 %v940
  %v942 = vpop.f32.mrf.mxu0
  %v943 = vadd.f32 0.0, %v942
  %v944 = vand.u32 %v454, 4294901760
  %v945 = vsub.f32 %v454, %v944
  %v946 = vand.u32 %v945, 4294901760
  %v947 = vsub.f32 %v945, %v946
  %v948 = vand.u32 %v947, 4294901760
  %949 = vmatmul.f32.gmra.mxu0 %v948
  %v950 = vpop.f32.mrf.mxu0
  %v951 = vadd.f32 0.0, %v950
  %v952 = vand.u32 %v455, 4294901760
  %v953 = vsub.f32 %v455, %v952
  %v954 = vand.u32 %v953, 4294901760
  %v955 = vsub.f32 %v953, %v954
  %v956 = vand.u32 %v955, 4294901760
  %957 = vmatmul.f32.gmra.mxu0 %v956
  %v958 = vpop.f32.mrf.mxu0
  %v959 = vadd.f32 0.0, %v958
  %v960 = vand.u32 %v456, 4294901760
  %v961 = vsub.f32 %v456, %v960
  %v962 = vand.u32 %v961, 4294901760
  %v963 = vsub.f32 %v961, %v962
  %v964 = vand.u32 %v963, 4294901760
  %965 = vmatmul.f32.gmra.mxu0 %v964
  %v966 = vpop.f32.mrf.mxu0
  %v967 = vadd.f32 0.0, %v966
  %v968 = vand.u32 %v457, 4294901760
  %v969 = vsub.f32 %v457, %v968
  %v970 = vand.u32 %v969, 4294901760
  %v971 = vsub.f32 %v969, %v970
  %v972 = vand.u32 %v971, 4294901760
  %973 = vmatmul.f32.gmra.mxu0 %v972
  %v974 = vpop.f32.mrf.mxu0
  %v975 = vadd.f32 0.0, %v974
  %v976 = vand.u32 %v458, 4294901760
  %v977 = vsub.f32 %v458, %v976
  %v978 = vand.u32 %v977, 4294901760
  %v979 = vsub.f32 %v977, %v978
  %v980 = vand.u32 %v979, 4294901760
  %981 = vmatmul.f32.gmra.mxu0 %v980
  %v982 = vpop.f32.mrf.mxu0
  %v983 = vadd.f32 0.0, %v982
  %v984 = vand.u32 %v459, 4294901760
  %v985 = vsub.f32 %v459, %v984
  %v986 = vand.u32 %v985, 4294901760
  %v987 = vsub.f32 %v985, %v986
  %v988 = vand.u32 %v987, 4294901760
  %989 = vmatmul.f32.gmra.mxu0 %v988
  %v990 = vpop.f32.mrf.mxu0
  %v991 = vadd.f32 0.0, %v990
  %v992 = vand.u32 %v460, 4294901760
  %v993 = vsub.f32 %v460, %v992
  %v994 = vand.u32 %v993, 4294901760
  %v995 = vsub.f32 %v993, %v994
  %v996 = vand.u32 %v995, 4294901760
  %997 = vmatmul.f32.gmra.mxu0 %v996
  %v998 = vpop.f32.mrf.mxu0
  %v999 = vadd.f32 0.0, %v998
  %v1000 = vand.u32 %v461, 4294901760
  %v1001 = vsub.f32 %v461, %v1000
  %v1002 = vand.u32 %v1001, 4294901760
  %v1003 = vsub.f32 %v1001, %v1002
  %v1004 = vand.u32 %v1003, 4294901760
  %1005 = vmatmul.f32.gmra.mxu0 %v1004
  %v1006 = vpop.f32.mrf.mxu0
  %v1007 = vadd.f32 0.0, %v1006
  %v1008 = vand.u32 %v462, 4294901760
  %v1009 = vsub.f32 %v462, %v1008
  %v1010 = vand.u32 %v1009, 4294901760
  %v1011 = vsub.f32 %v1009, %v1010
  %v1012 = vand.u32 %v1011, 4294901760
  %1013 = vmatmul.f32.gmra.mxu0 %v1012
  %v1014 = vpop.f32.mrf.mxu0
  %v1015 = vadd.f32 0.0, %v1014
  %v1016 = vand.u32 %v463, 4294901760
  %v1017 = vsub.f32 %v463, %v1016
  %v1018 = vand.u32 %v1017, 4294901760
  %v1019 = vsub.f32 %v1017, %v1018
  %v1020 = vand.u32 %v1019, 4294901760
  %1021 = vmatmul.f32.gmra.mxu0 %v1020
  %v1022 = vpop.f32.mrf.mxu0
  %v1023 = vadd.f32 0.0, %v1022
  %1024 = vdwg.mxu0
  %v1025 = vand.u32 %v479, 4294901760
  %v1026 = vsub.f32 %v479, %v1025
  %v1027 = vand.u32 %v1026, 4294901760
  %v1028 = vsub.f32 %v1026, %v1027
  %v1029 = vand.u32 %v1028, 4294901760
  %1030 = vmatpush.msra.mxu0 %v1029
  %v1031 = vand.u32 %v478, 4294901760
  %v1032 = vsub.f32 %v478, %v1031
  %v1033 = vand.u32 %v1032, 4294901760
  %v1034 = vsub.f32 %v1032, %v1033
  %v1035 = vand.u32 %v1034, 4294901760
  %1036 = vmatpush.msra.mxu0 %v1035
  %v1037 = vand.u32 %v477, 4294901760
  %v1038 = vsub.f32 %v477, %v1037
  %v1039 = vand.u32 %v1038, 4294901760
  %v1040 = vsub.f32 %v1038, %v1039
  %v1041 = vand.u32 %v1040, 4294901760
  %1042 = vmatpush.msra.mxu0 %v1041
  %v1043 = vand.u32 %v476, 4294901760
  %v1044 = vsub.f32 %v476, %v1043
  %v1045 = vand.u32 %v1044, 4294901760
  %v1046 = vsub.f32 %v1044, %v1045
  %v1047 = vand.u32 %v1046, 4294901760
  %1048 = vmatpush.msra.mxu0 %v1047
  %v1049 = vand.u32 %v475, 4294901760
  %v1050 = vsub.f32 %v475, %v1049
  %v1051 = vand.u32 %v1050, 4294901760
  %v1052 = vsub.f32 %v1050, %v1051
  %v1053 = vand.u32 %v1052, 4294901760
  %1054 = vmatpush.msra.mxu0 %v1053
  %v1055 = vand.u32 %v474, 4294901760
  %v1056 = vsub.f32 %v474, %v1055
  %v1057 = vand.u32 %v1056, 4294901760
  %v1058 = vsub.f32 %v1056, %v1057
  %v1059 = vand.u32 %v1058, 4294901760
  %1060 = vmatpush.msra.mxu0 %v1059
  %v1061 = vand.u32 %v473, 4294901760
  %v1062 = vsub.f32 %v473, %v1061
  %v1063 = vand.u32 %v1062, 4294901760
  %v1064 = vsub.f32 %v1062, %v1063
  %v1065 = vand.u32 %v1064, 4294901760
  %1066 = vmatpush.msra.mxu0 %v1065
  %v1067 = vand.u32 %v472, 4294901760
  %v1068 = vsub.f32 %v472, %v1067
  %v1069 = vand.u32 %v1068, 4294901760
  %v1070 = vsub.f32 %v1068, %v1069
  %v1071 = vand.u32 %v1070, 4294901760
  %1072 = vmatpush.msra.mxu0 %v1071
  %v1073 = vand.u32 %v471, 4294901760
  %v1074 = vsub.f32 %v471, %v1073
  %v1075 = vand.u32 %v1074, 4294901760
  %v1076 = vsub.f32 %v1074, %v1075
  %v1077 = vand.u32 %v1076, 4294901760
  %1078 = vmatpush.msra.mxu0 %v1077
  %v1079 = vand.u32 %v470, 4294901760
  %v1080 = vsub.f32 %v470, %v1079
  %v1081 = vand.u32 %v1080, 4294901760
  %v1082 = vsub.f32 %v1080, %v1081
  %v1083 = vand.u32 %v1082, 4294901760
  %1084 = vmatpush.msra.mxu0 %v1083
  %v1085 = vand.u32 %v469, 4294901760
  %v1086 = vsub.f32 %v469, %v1085
  %v1087 = vand.u32 %v1086, 4294901760
  %v1088 = vsub.f32 %v1086, %v1087
  %v1089 = vand.u32 %v1088, 4294901760
  %1090 = vmatpush.msra.mxu0 %v1089
  %v1091 = vand.u32 %v468, 4294901760
  %v1092 = vsub.f32 %v468, %v1091
  %v1093 = vand.u32 %v1092, 4294901760
  %v1094 = vsub.f32 %v1092, %v1093
  %v1095 = vand.u32 %v1094, 4294901760
  %1096 = vmatpush.msra.mxu0 %v1095
  %v1097 = vand.u32 %v467, 4294901760
  %v1098 = vsub.f32 %v467, %v1097
  %v1099 = vand.u32 %v1098, 4294901760
  %v1100 = vsub.f32 %v1098, %v1099
  %v1101 = vand.u32 %v1100, 4294901760
  %1102 = vmatpush.msra.mxu0 %v1101
  %v1103 = vand.u32 %v466, 4294901760
  %v1104 = vsub.f32 %v466, %v1103
  %v1105 = vand.u32 %v1104, 4294901760
  %v1106 = vsub.f32 %v1104, %v1105
  %v1107 = vand.u32 %v1106, 4294901760
  %1108 = vmatpush.msra.mxu0 %v1107
  %v1109 = vand.u32 %v465, 4294901760
  %v1110 = vsub.f32 %v465, %v1109
  %v1111 = vand.u32 %v1110, 4294901760
  %v1112 = vsub.f32 %v1110, %v1111
  %v1113 = vand.u32 %v1112, 4294901760
  %1114 = vmatpush.msra.mxu0 %v1113
  %v1115 = vand.u32 %v464, 4294901760
  %v1116 = vsub.f32 %v464, %v1115
  %v1117 = vand.u32 %v1116, 4294901760
  %v1118 = vsub.f32 %v1116, %v1117
  %v1119 = vand.u32 %v1118, 4294901760
  %1120 = vmatpush.msra.mxu0 %v1119
  %v1121 = vand.u32 %v400, 4294901760
  %1122 = vmatmul.f32.gmra.mxu0 %v1121
  %v1123 = vpop.f32.mrf.mxu0
  %v1124 = vadd.f32 %v519, %v1123
  %v1125 = vand.u32 %v401, 4294901760
  %1126 = vmatmul.f32.gmra.mxu0 %v1125
  %v1127 = vpop.f32.mrf.mxu0
  %v1128 = vadd.f32 %v527, %v1127
  %v1129 = vand.u32 %v402, 4294901760
  %1130 = vmatmul.f32.gmra.mxu0 %v1129
  %v1131 = vpop.f32.mrf.mxu0
  %v1132 = vadd.f32 %v535, %v1131
  %v1133 = vand.u32 %v403, 4294901760
  %1134 = vmatmul.f32.gmra.mxu0 %v1133
  %v1135 = vpop.f32.mrf.mxu0
  %v1136 = vadd.f32 %v543, %v1135
  %v1137 = vand.u32 %v404, 4294901760
  %1138 = vmatmul.f32.gmra.mxu0 %v1137
  %v1139 = vpop.f32.mrf.mxu0
  %v1140 = vadd.f32 %v551, %v1139
  %v1141 = vand.u32 %v405, 4294901760
  %1142 = vmatmul.f32.gmra.mxu0 %v1141
  %v1143 = vpop.f32.mrf.mxu0
  %v1144 = vadd.f32 %v559, %v1143
  %v1145 = vand.u32 %v406, 4294901760
  %1146 = vmatmul.f32.gmra.mxu0 %v1145
  %v1147 = vpop.f32.mrf.mxu0
  %v1148 = vadd.f32 %v567, %v1147
  %v1149 = vand.u32 %v407, 4294901760
  %1150 = vmatmul.f32.gmra.mxu0 %v1149
  %v1151 = vpop.f32.mrf.mxu0
  %v1152 = vadd.f32 %v575, %v1151
  %v1153 = vand.u32 %v408, 4294901760
  %1154 = vmatmul.f32.gmra.mxu0 %v1153
  %v1155 = vpop.f32.mrf.mxu0
  %v1156 = vadd.f32 %v583, %v1155
  %v1157 = vand.u32 %v409, 4294901760
  %1158 = vmatmul.f32.gmra.mxu0 %v1157
  %v1159 = vpop.f32.mrf.mxu0
  %v1160 = vadd.f32 %v591, %v1159
  %v1161 = vand.u32 %v410, 4294901760
  %1162 = vmatmul.f32.gmra.mxu0 %v1161
  %v1163 = vpop.f32.mrf.mxu0
  %v1164 = vadd.f32 %v599, %v1163
  %v1165 = vand.u32 %v411, 4294901760
  %1166 = vmatmul.f32.gmra.mxu0 %v1165
  %v1167 = vpop.f32.mrf.mxu0
  %v1168 = vadd.f32 %v607, %v1167
  %v1169 = vand.u32 %v412, 4294901760
  %1170 = vmatmul.f32.gmra.mxu0 %v1169
  %v1171 = vpop.f32.mrf.mxu0
  %v1172 = vadd.f32 %v615, %v1171
  %v1173 = vand.u32 %v413, 4294901760
  %1174 = vmatmul.f32.gmra.mxu0 %v1173
  %v1175 = vpop.f32.mrf.mxu0
  %v1176 = vadd.f32 %v623, %v1175
  %v1177 = vand.u32 %v414, 4294901760
  %1178 = vmatmul.f32.gmra.mxu0 %v1177
  %v1179 = vpop.f32.mrf.mxu0
  %v1180 = vadd.f32 %v631, %v1179
  %v1181 = vand.u32 %v415, 4294901760
  %1182 = vmatmul.f32.gmra.mxu0 %v1181
  %v1183 = vpop.f32.mrf.mxu0
  %v1184 = vadd.f32 %v639, %v1183
  %v1185 = vand.u32 %v416, 4294901760
  %1186 = vmatmul.f32.gmra.mxu0 %v1185
  %v1187 = vpop.f32.mrf.mxu0
  %v1188 = vadd.f32 %v647, %v1187
  %v1189 = vand.u32 %v417, 4294901760
  %1190 = vmatmul.f32.gmra.mxu0 %v1189
  %v1191 = vpop.f32.mrf.mxu0
  %v1192 = vadd.f32 %v655, %v1191
  %v1193 = vand.u32 %v418, 4294901760
  %1194 = vmatmul.f32.gmra.mxu0 %v1193
  %v1195 = vpop.f32.mrf.mxu0
  %v1196 = vadd.f32 %v663, %v1195
  %v1197 = vand.u32 %v419, 4294901760
  %1198 = vmatmul.f32.gmra.mxu0 %v1197
  %v1199 = vpop.f32.mrf.mxu0
  %v1200 = vadd.f32 %v671, %v1199
  %v1201 = vand.u32 %v420, 4294901760
  %1202 = vmatmul.f32.gmra.mxu0 %v1201
  %v1203 = vpop.f32.mrf.mxu0
  %v1204 = vadd.f32 %v679, %v1203
  %v1205 = vand.u32 %v421, 4294901760
  %1206 = vmatmul.f32.gmra.mxu0 %v1205
  %v1207 = vpop.f32.mrf.mxu0
  %v1208 = vadd.f32 %v687, %v1207
  %v1209 = vand.u32 %v422, 4294901760
  %1210 = vmatmul.f32.gmra.mxu0 %v1209
  %v1211 = vpop.f32.mrf.mxu0
  %v1212 = vadd.f32 %v695, %v1211
  %v1213 = vand.u32 %v423, 4294901760
  %1214 = vmatmul.f32.gmra.mxu0 %v1213
  %v1215 = vpop.f32.mrf.mxu0
  %v1216 = vadd.f32 %v703, %v1215
  %v1217 = vand.u32 %v424, 4294901760
  %1218 = vmatmul.f32.gmra.mxu0 %v1217
  %v1219 = vpop.f32.mrf.mxu0
  %v1220 = vadd.f32 %v711, %v1219
  %v1221 = vand.u32 %v425, 4294901760
  %1222 = vmatmul.f32.gmra.mxu0 %v1221
  %v1223 = vpop.f32.mrf.mxu0
  %v1224 = vadd.f32 %v719, %v1223
  %v1225 = vand.u32 %v426, 4294901760
  %1226 = vmatmul.f32.gmra.mxu0 %v1225
  %v1227 = vpop.f32.mrf.mxu0
  %v1228 = vadd.f32 %v727, %v1227
  %v1229 = vand.u32 %v427, 4294901760
  %1230 = vmatmul.f32.gmra.mxu0 %v1229
  %v1231 = vpop.f32.mrf.mxu0
  %v1232 = vadd.f32 %v735, %v1231
  %v1233 = vand.u32 %v428, 4294901760
  %1234 = vmatmul.f32.gmra.mxu0 %v1233
  %v1235 = vpop.f32.mrf.mxu0
  %v1236 = vadd.f32 %v743, %v1235
  %v1237 = vand.u32 %v429, 4294901760
  %1238 = vmatmul.f32.gmra.mxu0 %v1237
  %v1239 = vpop.f32.mrf.mxu0
  %v1240 = vadd.f32 %v751, %v1239
  %v1241 = vand.u32 %v430, 4294901760
  %1242 = vmatmul.f32.gmra.mxu0 %v1241
  %v1243 = vpop.f32.mrf.mxu0
  %v1244 = vadd.f32 %v759, %v1243
  %v1245 = vand.u32 %v431, 4294901760
  %1246 = vmatmul.f32.gmra.mxu0 %v1245
  %v1247 = vpop.f32.mrf.mxu0
  %v1248 = vadd.f32 %v767, %v1247
  %v1249 = vand.u32 %v432, 4294901760
  %1250 = vmatmul.f32.gmra.mxu0 %v1249
  %v1251 = vpop.f32.mrf.mxu0
  %v1252 = vadd.f32 %v775, %v1251
  %v1253 = vand.u32 %v433, 4294901760
  %1254 = vmatmul.f32.gmra.mxu0 %v1253
  %v1255 = vpop.f32.mrf.mxu0
  %v1256 = vadd.f32 %v783, %v1255
  %v1257 = vand.u32 %v434, 4294901760
  %1258 = vmatmul.f32.gmra.mxu0 %v1257
  %v1259 = vpop.f32.mrf.mxu0
  %v1260 = vadd.f32 %v791, %v1259
  %v1261 = vand.u32 %v435, 4294901760
  %1262 = vmatmul.f32.gmra.mxu0 %v1261
  %v1263 = vpop.f32.mrf.mxu0
  %v1264 = vadd.f32 %v799, %v1263
  %v1265 = vand.u32 %v436, 4294901760
  %1266 = vmatmul.f32.gmra.mxu0 %v1265
  %v1267 = vpop.f32.mrf.mxu0
  %v1268 = vadd.f32 %v807, %v1267
  %v1269 = vand.u32 %v437, 4294901760
  %1270 = vmatmul.f32.gmra.mxu0 %v1269
  %v1271 = vpop.f32.mrf.mxu0
  %v1272 = vadd.f32 %v815, %v1271
  %v1273 = vand.u32 %v438, 4294901760
  %1274 = vmatmul.f32.gmra.mxu0 %v1273
  %v1275 = vpop.f32.mrf.mxu0
  %v1276 = vadd.f32 %v823, %v1275
  %v1277 = vand.u32 %v439, 4294901760
  %1278 = vmatmul.f32.gmra.mxu0 %v1277
  %v1279 = vpop.f32.mrf.mxu0
  %v1280 = vadd.f32 %v831, %v1279
  %v1281 = vand.u32 %v440, 4294901760
  %1282 = vmatmul.f32.gmra.mxu0 %v1281
  %v1283 = vpop.f32.mrf.mxu0
  %v1284 = vadd.f32 %v839, %v1283
  %v1285 = vand.u32 %v441, 4294901760
  %1286 = vmatmul.f32.gmra.mxu0 %v1285
  %v1287 = vpop.f32.mrf.mxu0
  %v1288 = vadd.f32 %v847, %v1287
  %v1289 = vand.u32 %v442, 4294901760
  %1290 = vmatmul.f32.gmra.mxu0 %v1289
  %v1291 = vpop.f32.mrf.mxu0
  %v1292 = vadd.f32 %v855, %v1291
  %v1293 = vand.u32 %v443, 4294901760
  %1294 = vmatmul.f32.gmra.mxu0 %v1293
  %v1295 = vpop.f32.mrf.mxu0
  %v1296 = vadd.f32 %v863, %v1295
  %v1297 = vand.u32 %v444, 4294901760
  %1298 = vmatmul.f32.gmra.mxu0 %v1297
  %v1299 = vpop.f32.mrf.mxu0
  %v1300 = vadd.f32 %v871, %v1299
  %v1301 = vand.u32 %v445, 4294901760
  %1302 = vmatmul.f32.gmra.mxu0 %v1301
  %v1303 = vpop.f32.mrf.mxu0
  %v1304 = vadd.f32 %v879, %v1303
  %v1305 = vand.u32 %v446, 4294901760
  %1306 = vmatmul.f32.gmra.mxu0 %v1305
  %v1307 = vpop.f32.mrf.mxu0
  %v1308 = vadd.f32 %v887, %v1307
  %v1309 = vand.u32 %v447, 4294901760
  %1310 = vmatmul.f32.gmra.mxu0 %v1309
  %v1311 = vpop.f32.mrf.mxu0
  %v1312 = vadd.f32 %v895, %v1311
  %v1313 = vand.u32 %v448, 4294901760
  %1314 = vmatmul.f32.gmra.mxu0 %v1313
  %v1315 = vpop.f32.mrf.mxu0
  %v1316 = vadd.f32 %v903, %v1315
  %v1317 = vand.u32 %v449, 4294901760
  %1318 = vmatmul.f32.gmra.mxu0 %v1317
  %v1319 = vpop.f32.mrf.mxu0
  %v1320 = vadd.f32 %v911, %v1319
  %v1321 = vand.u32 %v450, 4294901760
  %1322 = vmatmul.f32.gmra.mxu0 %v1321
  %v1323 = vpop.f32.mrf.mxu0
  %v1324 = vadd.f32 %v919, %v1323
  %v1325 = vand.u32 %v451, 4294901760
  %1326 = vmatmul.f32.gmra.mxu0 %v1325
  %v1327 = vpop.f32.mrf.mxu0
  %v1328 = vadd.f32 %v927, %v1327
  %v1329 = vand.u32 %v452, 4294901760
  %1330 = vmatmul.f32.gmra.mxu0 %v1329
  %v1331 = vpop.f32.mrf.mxu0
  %v1332 = vadd.f32 %v935, %v1331
  %v1333 = vand.u32 %v453, 4294901760
  %1334 = vmatmul.f32.gmra.mxu0 %v1333
  %v1335 = vpop.f32.mrf.mxu0
  %v1336 = vadd.f32 %v943, %v1335
  %v1337 = vand.u32 %v454, 4294901760
  %1338 = vmatmul.f32.gmra.mxu0 %v1337
  %v1339 = vpop.f32.mrf.mxu0
  %v1340 = vadd.f32 %v951, %v1339
  %v1341 = vand.u32 %v455, 4294901760
  %1342 = vmatmul.f32.gmra.mxu0 %v1341
  %v1343 = vpop.f32.mrf.mxu0
  %v1344 = vadd.f32 %v959, %v1343
  %v1345 = vand.u32 %v456, 4294901760
  %1346 = vmatmul.f32.gmra.mxu0 %v1345
  %v1347 = vpop.f32.mrf.mxu0
  %v1348 = vadd.f32 %v967, %v1347
  %v1349 = vand.u32 %v457, 4294901760
  %1350 = vmatmul.f32.gmra.mxu0 %v1349
  %v1351 = vpop.f32.mrf.mxu0
  %v1352 = vadd.f32 %v975, %v1351
  %v1353 = vand.u32 %v458, 4294901760
  %1354 = vmatmul.f32.gmra.mxu0 %v1353
  %v1355 = vpop.f32.mrf.mxu0
  %v1356 = vadd.f32 %v983, %v1355
  %v1357 = vand.u32 %v459, 4294901760
  %1358 = vmatmul.f32.gmra.mxu0 %v1357
  %v1359 = vpop.f32.mrf.mxu0
  %v1360 = vadd.f32 %v991, %v1359
  %v1361 = vand.u32 %v460, 4294901760
  %1362 = vmatmul.f32.gmra.mxu0 %v1361
  %v1363 = vpop.f32.mrf.mxu0
  %v1364 = vadd.f32 %v999, %v1363
  %v1365 = vand.u32 %v461, 4294901760
  %1366 = vmatmul.f32.gmra.mxu0 %v1365
  %v1367 = vpop.f32.mrf.mxu0
  %v1368 = vadd.f32 %v1007, %v1367
  %v1369 = vand.u32 %v462, 4294901760
  %1370 = vmatmul.f32.gmra.mxu0 %v1369
  %v1371 = vpop.f32.mrf.mxu0
  %v1372 = vadd.f32 %v1015, %v1371
  %v1373 = vand.u32 %v463, 4294901760
  %1374 = vmatmul.f32.gmra.mxu0 %v1373
  %v1375 = vpop.f32.mrf.mxu0
  %v1376 = vadd.f32 %v1023, %v1375
  %1377 = vdwg.mxu0
  %v1378 = vand.u32 %v479, 4294901760
  %v1379 = vsub.f32 %v479, %v1378
  %1380 = vmatpush.msra.mxu0 %v1379
  %v1381 = vand.u32 %v478, 4294901760
  %v1382 = vsub.f32 %v478, %v1381
  %1383 = vmatpush.msra.mxu0 %v1382
  %v1384 = vand.u32 %v477, 4294901760
  %v1385 = vsub.f32 %v477, %v1384
  %1386 = vmatpush.msra.mxu0 %v1385
  %v1387 = vand.u32 %v476, 4294901760
  %v1388 = vsub.f32 %v476, %v1387
  %1389 = vmatpush.msra.mxu0 %v1388
  %v1390 = vand.u32 %v475, 4294901760
  %v1391 = vsub.f32 %v475, %v1390
  %1392 = vmatpush.msra.mxu0 %v1391
  %v1393 = vand.u32 %v474, 4294901760
  %v1394 = vsub.f32 %v474, %v1393
  %1395 = vmatpush.msra.mxu0 %v1394
  %v1396 = vand.u32 %v473, 4294901760
  %v1397 = vsub.f32 %v473, %v1396
  %1398 = vmatpush.msra.mxu0 %v1397
  %v1399 = vand.u32 %v472, 4294901760
  %v1400 = vsub.f32 %v472, %v1399
  %1401 = vmatpush.msra.mxu0 %v1400
  %v1402 = vand.u32 %v471, 4294901760
  %v1403 = vsub.f32 %v471, %v1402
  %1404 = vmatpush.msra.mxu0 %v1403
  %v1405 = vand.u32 %v470, 4294901760
  %v1406 = vsub.f32 %v470, %v1405
  %1407 = vmatpush.msra.mxu0 %v1406
  %v1408 = vand.u32 %v469, 4294901760
  %v1409 = vsub.f32 %v469, %v1408
  %1410 = vmatpush.msra.mxu0 %v1409
  %v1411 = vand.u32 %v468, 4294901760
  %v1412 = vsub.f32 %v468, %v1411
  %1413 = vmatpush.msra.mxu0 %v1412
  %v1414 = vand.u32 %v467, 4294901760
  %v1415 = vsub.f32 %v467, %v1414
  %1416 = vmatpush.msra.mxu0 %v1415
  %v1417 = vand.u32 %v466, 4294901760
  %v1418 = vsub.f32 %v466, %v1417
  %1419 = vmatpush.msra.mxu0 %v1418
  %v1420 = vand.u32 %v465, 4294901760
  %v1421 = vsub.f32 %v465, %v1420
  %1422 = vmatpush.msra.mxu0 %v1421
  %v1423 = vand.u32 %v464, 4294901760
  %v1424 = vsub.f32 %v464, %v1423
  %1425 = vmatpush.msra.mxu0 %v1424
  %v1426 = vand.u32 %v400, 4294901760
  %v1427 = vsub.f32 %v400, %v1426
  %1428 = vmatmul.f32.gmra.mxu0 %v1427
  %v1429 = vpop.f32.mrf.mxu0
  %v1430 = vadd.f32 %v1124, %v1429
  %v1431 = vand.u32 %v401, 4294901760
  %v1432 = vsub.f32 %v401, %v1431
  %1433 = vmatmul.f32.gmra.mxu0 %v1432
  %v1434 = vpop.f32.mrf.mxu0
  %v1435 = vadd.f32 %v1128, %v1434
  %v1436 = vand.u32 %v402, 4294901760
  %v1437 = vsub.f32 %v402, %v1436
  %1438 = vmatmul.f32.gmra.mxu0 %v1437
  %v1439 = vpop.f32.mrf.mxu0
  %v1440 = vadd.f32 %v1132, %v1439
  %v1441 = vand.u32 %v403, 4294901760
  %v1442 = vsub.f32 %v403, %v1441
  %1443 = vmatmul.f32.gmra.mxu0 %v1442
  %v1444 = vpop.f32.mrf.mxu0
  %v1445 = vadd.f32 %v1136, %v1444
  %v1446 = vand.u32 %v404, 4294901760
  %v1447 = vsub.f32 %v404, %v1446
  %1448 = vmatmul.f32.gmra.mxu0 %v1447
  %v1449 = vpop.f32.mrf.mxu0
  %v1450 = vadd.f32 %v1140, %v1449
  %v1451 = vand.u32 %v405, 4294901760
  %v1452 = vsub.f32 %v405, %v1451
  %1453 = vmatmul.f32.gmra.mxu0 %v1452
  %v1454 = vpop.f32.mrf.mxu0
  %v1455 = vadd.f32 %v1144, %v1454
  %v1456 = vand.u32 %v406, 4294901760
  %v1457 = vsub.f32 %v406, %v1456
  %1458 = vmatmul.f32.gmra.mxu0 %v1457
  %v1459 = vpop.f32.mrf.mxu0
  %v1460 = vadd.f32 %v1148, %v1459
  %v1461 = vand.u32 %v407, 4294901760
  %v1462 = vsub.f32 %v407, %v1461
  %1463 = vmatmul.f32.gmra.mxu0 %v1462
  %v1464 = vpop.f32.mrf.mxu0
  %v1465 = vadd.f32 %v1152, %v1464
  %v1466 = vand.u32 %v408, 4294901760
  %v1467 = vsub.f32 %v408, %v1466
  %1468 = vmatmul.f32.gmra.mxu0 %v1467
  %v1469 = vpop.f32.mrf.mxu0
  %v1470 = vadd.f32 %v1156, %v1469
  %v1471 = vand.u32 %v409, 4294901760
  %v1472 = vsub.f32 %v409, %v1471
  %1473 = vmatmul.f32.gmra.mxu0 %v1472
  %v1474 = vpop.f32.mrf.mxu0
  %v1475 = vadd.f32 %v1160, %v1474
  %v1476 = vand.u32 %v410, 4294901760
  %v1477 = vsub.f32 %v410, %v1476
  %1478 = vmatmul.f32.gmra.mxu0 %v1477
  %v1479 = vpop.f32.mrf.mxu0
  %v1480 = vadd.f32 %v1164, %v1479
  %v1481 = vand.u32 %v411, 4294901760
  %v1482 = vsub.f32 %v411, %v1481
  %1483 = vmatmul.f32.gmra.mxu0 %v1482
  %v1484 = vpop.f32.mrf.mxu0
  %v1485 = vadd.f32 %v1168, %v1484
  %v1486 = vand.u32 %v412, 4294901760
  %v1487 = vsub.f32 %v412, %v1486
  %1488 = vmatmul.f32.gmra.mxu0 %v1487
  %v1489 = vpop.f32.mrf.mxu0
  %v1490 = vadd.f32 %v1172, %v1489
  %v1491 = vand.u32 %v413, 4294901760
  %v1492 = vsub.f32 %v413, %v1491
  %1493 = vmatmul.f32.gmra.mxu0 %v1492
  %v1494 = vpop.f32.mrf.mxu0
  %v1495 = vadd.f32 %v1176, %v1494
  %v1496 = vand.u32 %v414, 4294901760
  %v1497 = vsub.f32 %v414, %v1496
  %1498 = vmatmul.f32.gmra.mxu0 %v1497
  %v1499 = vpop.f32.mrf.mxu0
  %v1500 = vadd.f32 %v1180, %v1499
  %v1501 = vand.u32 %v415, 4294901760
  %v1502 = vsub.f32 %v415, %v1501
  %1503 = vmatmul.f32.gmra.mxu0 %v1502
  %v1504 = vpop.f32.mrf.mxu0
  %v1505 = vadd.f32 %v1184, %v1504
  %v1506 = vand.u32 %v416, 4294901760
  %v1507 = vsub.f32 %v416, %v1506
  %1508 = vmatmul.f32.gmra.mxu0 %v1507
  %v1509 = vpop.f32.mrf.mxu0
  %v1510 = vadd.f32 %v1188, %v1509
  %v1511 = vand.u32 %v417, 4294901760
  %v1512 = vsub.f32 %v417, %v1511
  %1513 = vmatmul.f32.gmra.mxu0 %v1512
  %v1514 = vpop.f32.mrf.mxu0
  %v1515 = vadd.f32 %v1192, %v1514
  %v1516 = vand.u32 %v418, 4294901760
  %v1517 = vsub.f32 %v418, %v1516
  %1518 = vmatmul.f32.gmra.mxu0 %v1517
  %v1519 = vpop.f32.mrf.mxu0
  %v1520 = vadd.f32 %v1196, %v1519
  %v1521 = vand.u32 %v419, 4294901760
  %v1522 = vsub.f32 %v419, %v1521
  %1523 = vmatmul.f32.gmra.mxu0 %v1522
  %v1524 = vpop.f32.mrf.mxu0
  %v1525 = vadd.f32 %v1200, %v1524
  %v1526 = vand.u32 %v420, 4294901760
  %v1527 = vsub.f32 %v420, %v1526
  %1528 = vmatmul.f32.gmra.mxu0 %v1527
  %v1529 = vpop.f32.mrf.mxu0
  %v1530 = vadd.f32 %v1204, %v1529
  %v1531 = vand.u32 %v421, 4294901760
  %v1532 = vsub.f32 %v421, %v1531
  %1533 = vmatmul.f32.gmra.mxu0 %v1532
  %v1534 = vpop.f32.mrf.mxu0
  %v1535 = vadd.f32 %v1208, %v1534
  %v1536 = vand.u32 %v422, 4294901760
  %v1537 = vsub.f32 %v422, %v1536
  %1538 = vmatmul.f32.gmra.mxu0 %v1537
  %v1539 = vpop.f32.mrf.mxu0
  %v1540 = vadd.f32 %v1212, %v1539
  %v1541 = vand.u32 %v423, 4294901760
  %v1542 = vsub.f32 %v423, %v1541
  %1543 = vmatmul.f32.gmra.mxu0 %v1542
  %v1544 = vpop.f32.mrf.mxu0
  %v1545 = vadd.f32 %v1216, %v1544
  %v1546 = vand.u32 %v424, 4294901760
  %v1547 = vsub.f32 %v424, %v1546
  %1548 = vmatmul.f32.gmra.mxu0 %v1547
  %v1549 = vpop.f32.mrf.mxu0
  %v1550 = vadd.f32 %v1220, %v1549
  %v1551 = vand.u32 %v425, 4294901760
  %v1552 = vsub.f32 %v425, %v1551
  %1553 = vmatmul.f32.gmra.mxu0 %v1552
  %v1554 = vpop.f32.mrf.mxu0
  %v1555 = vadd.f32 %v1224, %v1554
  %v1556 = vand.u32 %v426, 4294901760
  %v1557 = vsub.f32 %v426, %v1556
  %1558 = vmatmul.f32.gmra.mxu0 %v1557
  %v1559 = vpop.f32.mrf.mxu0
  %v1560 = vadd.f32 %v1228, %v1559
  %v1561 = vand.u32 %v427, 4294901760
  %v1562 = vsub.f32 %v427, %v1561
  %1563 = vmatmul.f32.gmra.mxu0 %v1562
  %v1564 = vpop.f32.mrf.mxu0
  %v1565 = vadd.f32 %v1232, %v1564
  %v1566 = vand.u32 %v428, 4294901760
  %v1567 = vsub.f32 %v428, %v1566
  %1568 = vmatmul.f32.gmra.mxu0 %v1567
  %v1569 = vpop.f32.mrf.mxu0
  %v1570 = vadd.f32 %v1236, %v1569
  %v1571 = vand.u32 %v429, 4294901760
  %v1572 = vsub.f32 %v429, %v1571
  %1573 = vmatmul.f32.gmra.mxu0 %v1572
  %v1574 = vpop.f32.mrf.mxu0
  %v1575 = vadd.f32 %v1240, %v1574
  %v1576 = vand.u32 %v430, 4294901760
  %v1577 = vsub.f32 %v430, %v1576
  %1578 = vmatmul.f32.gmra.mxu0 %v1577
  %v1579 = vpop.f32.mrf.mxu0
  %v1580 = vadd.f32 %v1244, %v1579
  %v1581 = vand.u32 %v431, 4294901760
  %v1582 = vsub.f32 %v431, %v1581
  %1583 = vmatmul.f32.gmra.mxu0 %v1582
  %v1584 = vpop.f32.mrf.mxu0
  %v1585 = vadd.f32 %v1248, %v1584
  %v1586 = vand.u32 %v432, 4294901760
  %v1587 = vsub.f32 %v432, %v1586
  %1588 = vmatmul.f32.gmra.mxu0 %v1587
  %v1589 = vpop.f32.mrf.mxu0
  %v1590 = vadd.f32 %v1252, %v1589
  %v1591 = vand.u32 %v433, 4294901760
  %v1592 = vsub.f32 %v433, %v1591
  %1593 = vmatmul.f32.gmra.mxu0 %v1592
  %v1594 = vpop.f32.mrf.mxu0
  %v1595 = vadd.f32 %v1256, %v1594
  %v1596 = vand.u32 %v434, 4294901760
  %v1597 = vsub.f32 %v434, %v1596
  %1598 = vmatmul.f32.gmra.mxu0 %v1597
  %v1599 = vpop.f32.mrf.mxu0
  %v1600 = vadd.f32 %v1260, %v1599
  %v1601 = vand.u32 %v435, 4294901760
  %v1602 = vsub.f32 %v435, %v1601
  %1603 = vmatmul.f32.gmra.mxu0 %v1602
  %v1604 = vpop.f32.mrf.mxu0
  %v1605 = vadd.f32 %v1264, %v1604
  %v1606 = vand.u32 %v436, 4294901760
  %v1607 = vsub.f32 %v436, %v1606
  %1608 = vmatmul.f32.gmra.mxu0 %v1607
  %v1609 = vpop.f32.mrf.mxu0
  %v1610 = vadd.f32 %v1268, %v1609
  %v1611 = vand.u32 %v437, 4294901760
  %v1612 = vsub.f32 %v437, %v1611
  %1613 = vmatmul.f32.gmra.mxu0 %v1612
  %v1614 = vpop.f32.mrf.mxu0
  %v1615 = vadd.f32 %v1272, %v1614
  %v1616 = vand.u32 %v438, 4294901760
  %v1617 = vsub.f32 %v438, %v1616
  %1618 = vmatmul.f32.gmra.mxu0 %v1617
  %v1619 = vpop.f32.mrf.mxu0
  %v1620 = vadd.f32 %v1276, %v1619
  %v1621 = vand.u32 %v439, 4294901760
  %v1622 = vsub.f32 %v439, %v1621
  %1623 = vmatmul.f32.gmra.mxu0 %v1622
  %v1624 = vpop.f32.mrf.mxu0
  %v1625 = vadd.f32 %v1280, %v1624
  %v1626 = vand.u32 %v440, 4294901760
  %v1627 = vsub.f32 %v440, %v1626
  %1628 = vmatmul.f32.gmra.mxu0 %v1627
  %v1629 = vpop.f32.mrf.mxu0
  %v1630 = vadd.f32 %v1284, %v1629
  %v1631 = vand.u32 %v441, 4294901760
  %v1632 = vsub.f32 %v441, %v1631
  %1633 = vmatmul.f32.gmra.mxu0 %v1632
  %v1634 = vpop.f32.mrf.mxu0
  %v1635 = vadd.f32 %v1288, %v1634
  %v1636 = vand.u32 %v442, 4294901760
  %v1637 = vsub.f32 %v442, %v1636
  %1638 = vmatmul.f32.gmra.mxu0 %v1637
  %v1639 = vpop.f32.mrf.mxu0
  %v1640 = vadd.f32 %v1292, %v1639
  %v1641 = vand.u32 %v443, 4294901760
  %v1642 = vsub.f32 %v443, %v1641
  %1643 = vmatmul.f32.gmra.mxu0 %v1642
  %v1644 = vpop.f32.mrf.mxu0
  %v1645 = vadd.f32 %v1296, %v1644
  %v1646 = vand.u32 %v444, 4294901760
  %v1647 = vsub.f32 %v444, %v1646
  %1648 = vmatmul.f32.gmra.mxu0 %v1647
  %v1649 = vpop.f32.mrf.mxu0
  %v1650 = vadd.f32 %v1300, %v1649
  %v1651 = vand.u32 %v445, 4294901760
  %v1652 = vsub.f32 %v445, %v1651
  %1653 = vmatmul.f32.gmra.mxu0 %v1652
  %v1654 = vpop.f32.mrf.mxu0
  %v1655 = vadd.f32 %v1304, %v1654
  %v1656 = vand.u32 %v446, 4294901760
  %v1657 = vsub.f32 %v446, %v1656
  %1658 = vmatmul.f32.gmra.mxu0 %v1657
  %v1659 = vpop.f32.mrf.mxu0
  %v1660 = vadd.f32 %v1308, %v1659
  %v1661 = vand.u32 %v447, 4294901760
  %v1662 = vsub.f32 %v447, %v1661
  %1663 = vmatmul.f32.gmra.mxu0 %v1662
  %v1664 = vpop.f32.mrf.mxu0
  %v1665 = vadd.f32 %v1312, %v1664
  %v1666 = vand.u32 %v448, 4294901760
  %v1667 = vsub.f32 %v448, %v1666
  %1668 = vmatmul.f32.gmra.mxu0 %v1667
  %v1669 = vpop.f32.mrf.mxu0
  %v1670 = vadd.f32 %v1316, %v1669
  %v1671 = vand.u32 %v449, 4294901760
  %v1672 = vsub.f32 %v449, %v1671
  %1673 = vmatmul.f32.gmra.mxu0 %v1672
  %v1674 = vpop.f32.mrf.mxu0
  %v1675 = vadd.f32 %v1320, %v1674
  %v1676 = vand.u32 %v450, 4294901760
  %v1677 = vsub.f32 %v450, %v1676
  %1678 = vmatmul.f32.gmra.mxu0 %v1677
  %v1679 = vpop.f32.mrf.mxu0
  %v1680 = vadd.f32 %v1324, %v1679
  %v1681 = vand.u32 %v451, 4294901760
  %v1682 = vsub.f32 %v451, %v1681
  %1683 = vmatmul.f32.gmra.mxu0 %v1682
  %v1684 = vpop.f32.mrf.mxu0
  %v1685 = vadd.f32 %v1328, %v1684
  %v1686 = vand.u32 %v452, 4294901760
  %v1687 = vsub.f32 %v452, %v1686
  %1688 = vmatmul.f32.gmra.mxu0 %v1687
  %v1689 = vpop.f32.mrf.mxu0
  %v1690 = vadd.f32 %v1332, %v1689
  %v1691 = vand.u32 %v453, 4294901760
  %v1692 = vsub.f32 %v453, %v1691
  %1693 = vmatmul.f32.gmra.mxu0 %v1692
  %v1694 = vpop.f32.mrf.mxu0
  %v1695 = vadd.f32 %v1336, %v1694
  %v1696 = vand.u32 %v454, 4294901760
  %v1697 = vsub.f32 %v454, %v1696
  %1698 = vmatmul.f32.gmra.mxu0 %v1697
  %v1699 = vpop.f32.mrf.mxu0
  %v1700 = vadd.f32 %v1340, %v1699
  %v1701 = vand.u32 %v455, 4294901760
  %v1702 = vsub.f32 %v455, %v1701
  %1703 = vmatmul.f32.gmra.mxu0 %v1702
  %v1704 = vpop.f32.mrf.mxu0
  %v1705 = vadd.f32 %v1344, %v1704
  %v1706 = vand.u32 %v456, 4294901760
  %v1707 = vsub.f32 %v456, %v1706
  %1708 = vmatmul.f32.gmra.mxu0 %v1707
  %v1709 = vpop.f32.mrf.mxu0
  %v1710 = vadd.f32 %v1348, %v1709
  %v1711 = vand.u32 %v457, 4294901760
  %v1712 = vsub.f32 %v457, %v1711
  %1713 = vmatmul.f32.gmra.mxu0 %v1712
  %v1714 = vpop.f32.mrf.mxu0
  %v1715 = vadd.f32 %v1352, %v1714
  %v1716 = vand.u32 %v458, 4294901760
  %v1717 = vsub.f32 %v458, %v1716
  %1718 = vmatmul.f32.gmra.mxu0 %v1717
  %v1719 = vpop.f32.mrf.mxu0
  %v1720 = vadd.f32 %v1356, %v1719
  %v1721 = vand.u32 %v459, 4294901760
  %v1722 = vsub.f32 %v459, %v1721
  %1723 = vmatmul.f32.gmra.mxu0 %v1722
  %v1724 = vpop.f32.mrf.mxu0
  %v1725 = vadd.f32 %v1360, %v1724
  %v1726 = vand.u32 %v460, 4294901760
  %v1727 = vsub.f32 %v460, %v1726
  %1728 = vmatmul.f32.gmra.mxu0 %v1727
  %v1729 = vpop.f32.mrf.mxu0
  %v1730 = vadd.f32 %v1364, %v1729
  %v1731 = vand.u32 %v461, 4294901760
  %v1732 = vsub.f32 %v461, %v1731
  %1733 = vmatmul.f32.gmra.mxu0 %v1732
  %v1734 = vpop.f32.mrf.mxu0
  %v1735 = vadd.f32 %v1368, %v1734
  %v1736 = vand.u32 %v462, 4294901760
  %v1737 = vsub.f32 %v462, %v1736
  %1738 = vmatmul.f32.gmra.mxu0 %v1737
  %v1739 = vpop.f32.mrf.mxu0
  %v1740 = vadd.f32 %v1372, %v1739
  %v1741 = vand.u32 %v463, 4294901760
  %v1742 = vsub.f32 %v463, %v1741
  %1743 = vmatmul.f32.gmra.mxu0 %v1742
  %v1744 = vpop.f32.mrf.mxu0
  %v1745 = vadd.f32 %v1376, %v1744
  %1746 = vdwg.mxu0
  %v1747 = vand.u32 %v479, 4294901760
  %1748 = vmatpush.msra.mxu0 %v1747
  %v1749 = vand.u32 %v478, 4294901760
  %1750 = vmatpush.msra.mxu0 %v1749
  %v1751 = vand.u32 %v477, 4294901760
  %1752 = vmatpush.msra.mxu0 %v1751
  %v1753 = vand.u32 %v476, 4294901760
  %1754 = vmatpush.msra.mxu0 %v1753
  %v1755 = vand.u32 %v475, 4294901760
  %1756 = vmatpush.msra.mxu0 %v1755
  %v1757 = vand.u32 %v474, 4294901760
  %1758 = vmatpush.msra.mxu0 %v1757
  %v1759 = vand.u32 %v473, 4294901760
  %1760 = vmatpush.msra.mxu0 %v1759
  %v1761 = vand.u32 %v472, 4294901760
  %1762 = vmatpush.msra.mxu0 %v1761
  %v1763 = vand.u32 %v471, 4294901760
  %1764 = vmatpush.msra.mxu0 %v1763
  %v1765 = vand.u32 %v470, 4294901760
  %1766 = vmatpush.msra.mxu0 %v1765
  %v1767 = vand.u32 %v469, 4294901760
  %1768 = vmatpush.msra.mxu0 %v1767
  %v1769 = vand.u32 %v468, 4294901760
  %1770 = vmatpush.msra.mxu0 %v1769
  %v1771 = vand.u32 %v467, 4294901760
  %1772 = vmatpush.msra.mxu0 %v1771
  %v1773 = vand.u32 %v466, 4294901760
  %1774 = vmatpush.msra.mxu0 %v1773
  %v1775 = vand.u32 %v465, 4294901760
  %1776 = vmatpush.msra.mxu0 %v1775
  %v1777 = vand.u32 %v464, 4294901760
  %1778 = vmatpush.msra.mxu0 %v1777
  %v1779 = vand.u32 %v400, 4294901760
  %v1780 = vsub.f32 %v400, %v1779
  %v1781 = vand.u32 %v1780, 4294901760
  %1782 = vmatmul.f32.gmra.mxu0 %v1781
  %v1783 = vpop.f32.mrf.mxu0
  %v1784 = vadd.f32 %v1430, %v1783
  %v1785 = vand.u32 %v401, 4294901760
  %v1786 = vsub.f32 %v401, %v1785
  %v1787 = vand.u32 %v1786, 4294901760
  %1788 = vmatmul.f32.gmra.mxu0 %v1787
  %v1789 = vpop.f32.mrf.mxu0
  %v1790 = vadd.f32 %v1435, %v1789
  %v1791 = vand.u32 %v402, 4294901760
  %v1792 = vsub.f32 %v402, %v1791
  %v1793 = vand.u32 %v1792, 4294901760
  %1794 = vmatmul.f32.gmra.mxu0 %v1793
  %v1795 = vpop.f32.mrf.mxu0
  %v1796 = vadd.f32 %v1440, %v1795
  %v1797 = vand.u32 %v403, 4294901760
  %v1798 = vsub.f32 %v403, %v1797
  %v1799 = vand.u32 %v1798, 4294901760
  %1800 = vmatmul.f32.gmra.mxu0 %v1799
  %v1801 = vpop.f32.mrf.mxu0
  %v1802 = vadd.f32 %v1445, %v1801
  %v1803 = vand.u32 %v404, 4294901760
  %v1804 = vsub.f32 %v404, %v1803
  %v1805 = vand.u32 %v1804, 4294901760
  %1806 = vmatmul.f32.gmra.mxu0 %v1805
  %v1807 = vpop.f32.mrf.mxu0
  %v1808 = vadd.f32 %v1450, %v1807
  %v1809 = vand.u32 %v405, 4294901760
  %v1810 = vsub.f32 %v405, %v1809
  %v1811 = vand.u32 %v1810, 4294901760
  %1812 = vmatmul.f32.gmra.mxu0 %v1811
  %v1813 = vpop.f32.mrf.mxu0
  %v1814 = vadd.f32 %v1455, %v1813
  %v1815 = vand.u32 %v406, 4294901760
  %v1816 = vsub.f32 %v406, %v1815
  %v1817 = vand.u32 %v1816, 4294901760
  %1818 = vmatmul.f32.gmra.mxu0 %v1817
  %v1819 = vpop.f32.mrf.mxu0
  %v1820 = vadd.f32 %v1460, %v1819
  %v1821 = vand.u32 %v407, 4294901760
  %v1822 = vsub.f32 %v407, %v1821
  %v1823 = vand.u32 %v1822, 4294901760
  %1824 = vmatmul.f32.gmra.mxu0 %v1823
  %v1825 = vpop.f32.mrf.mxu0
  %v1826 = vadd.f32 %v1465, %v1825
  %v1827 = vand.u32 %v408, 4294901760
  %v1828 = vsub.f32 %v408, %v1827
  %v1829 = vand.u32 %v1828, 4294901760
  %1830 = vmatmul.f32.gmra.mxu0 %v1829
  %v1831 = vpop.f32.mrf.mxu0
  %v1832 = vadd.f32 %v1470, %v1831
  %v1833 = vand.u32 %v409, 4294901760
  %v1834 = vsub.f32 %v409, %v1833
  %v1835 = vand.u32 %v1834, 4294901760
  %1836 = vmatmul.f32.gmra.mxu0 %v1835
  %v1837 = vpop.f32.mrf.mxu0
  %v1838 = vadd.f32 %v1475, %v1837
  %v1839 = vand.u32 %v410, 4294901760
  %v1840 = vsub.f32 %v410, %v1839
  %v1841 = vand.u32 %v1840, 4294901760
  %1842 = vmatmul.f32.gmra.mxu0 %v1841
  %v1843 = vpop.f32.mrf.mxu0
  %v1844 = vadd.f32 %v1480, %v1843
  %v1845 = vand.u32 %v411, 4294901760
  %v1846 = vsub.f32 %v411, %v1845
  %v1847 = vand.u32 %v1846, 4294901760
  %1848 = vmatmul.f32.gmra.mxu0 %v1847
  %v1849 = vpop.f32.mrf.mxu0
  %v1850 = vadd.f32 %v1485, %v1849
  %v1851 = vand.u32 %v412, 4294901760
  %v1852 = vsub.f32 %v412, %v1851
  %v1853 = vand.u32 %v1852, 4294901760
  %1854 = vmatmul.f32.gmra.mxu0 %v1853
  %v1855 = vpop.f32.mrf.mxu0
  %v1856 = vadd.f32 %v1490, %v1855
  %v1857 = vand.u32 %v413, 4294901760
  %v1858 = vsub.f32 %v413, %v1857
  %v1859 = vand.u32 %v1858, 4294901760
  %1860 = vmatmul.f32.gmra.mxu0 %v1859
  %v1861 = vpop.f32.mrf.mxu0
  %v1862 = vadd.f32 %v1495, %v1861
  %v1863 = vand.u32 %v414, 4294901760
  %v1864 = vsub.f32 %v414, %v1863
  %v1865 = vand.u32 %v1864, 4294901760
  %1866 = vmatmul.f32.gmra.mxu0 %v1865
  %v1867 = vpop.f32.mrf.mxu0
  %v1868 = vadd.f32 %v1500, %v1867
  %v1869 = vand.u32 %v415, 4294901760
  %v1870 = vsub.f32 %v415, %v1869
  %v1871 = vand.u32 %v1870, 4294901760
  %1872 = vmatmul.f32.gmra.mxu0 %v1871
  %v1873 = vpop.f32.mrf.mxu0
  %v1874 = vadd.f32 %v1505, %v1873
  %v1875 = vand.u32 %v416, 4294901760
  %v1876 = vsub.f32 %v416, %v1875
  %v1877 = vand.u32 %v1876, 4294901760
  %1878 = vmatmul.f32.gmra.mxu0 %v1877
  %v1879 = vpop.f32.mrf.mxu0
  %v1880 = vadd.f32 %v1510, %v1879
  %v1881 = vand.u32 %v417, 4294901760
  %v1882 = vsub.f32 %v417, %v1881
  %v1883 = vand.u32 %v1882, 4294901760
  %1884 = vmatmul.f32.gmra.mxu0 %v1883
  %v1885 = vpop.f32.mrf.mxu0
  %v1886 = vadd.f32 %v1515, %v1885
  %v1887 = vand.u32 %v418, 4294901760
  %v1888 = vsub.f32 %v418, %v1887
  %v1889 = vand.u32 %v1888, 4294901760
  %1890 = vmatmul.f32.gmra.mxu0 %v1889
  %v1891 = vpop.f32.mrf.mxu0
  %v1892 = vadd.f32 %v1520, %v1891
  %v1893 = vand.u32 %v419, 4294901760
  %v1894 = vsub.f32 %v419, %v1893
  %v1895 = vand.u32 %v1894, 4294901760
  %1896 = vmatmul.f32.gmra.mxu0 %v1895
  %v1897 = vpop.f32.mrf.mxu0
  %v1898 = vadd.f32 %v1525, %v1897
  %v1899 = vand.u32 %v420, 4294901760
  %v1900 = vsub.f32 %v420, %v1899
  %v1901 = vand.u32 %v1900, 4294901760
  %1902 = vmatmul.f32.gmra.mxu0 %v1901
  %v1903 = vpop.f32.mrf.mxu0
  %v1904 = vadd.f32 %v1530, %v1903
  %v1905 = vand.u32 %v421, 4294901760
  %v1906 = vsub.f32 %v421, %v1905
  %v1907 = vand.u32 %v1906, 4294901760
  %1908 = vmatmul.f32.gmra.mxu0 %v1907
  %v1909 = vpop.f32.mrf.mxu0
  %v1910 = vadd.f32 %v1535, %v1909
  %v1911 = vand.u32 %v422, 4294901760
  %v1912 = vsub.f32 %v422, %v1911
  %v1913 = vand.u32 %v1912, 4294901760
  %1914 = vmatmul.f32.gmra.mxu0 %v1913
  %v1915 = vpop.f32.mrf.mxu0
  %v1916 = vadd.f32 %v1540, %v1915
  %v1917 = vand.u32 %v423, 4294901760
  %v1918 = vsub.f32 %v423, %v1917
  %v1919 = vand.u32 %v1918, 4294901760
  %1920 = vmatmul.f32.gmra.mxu0 %v1919
  %v1921 = vpop.f32.mrf.mxu0
  %v1922 = vadd.f32 %v1545, %v1921
  %v1923 = vand.u32 %v424, 4294901760
  %v1924 = vsub.f32 %v424, %v1923
  %v1925 = vand.u32 %v1924, 4294901760
  %1926 = vmatmul.f32.gmra.mxu0 %v1925
  %v1927 = vpop.f32.mrf.mxu0
  %v1928 = vadd.f32 %v1550, %v1927
  %v1929 = vand.u32 %v425, 4294901760
  %v1930 = vsub.f32 %v425, %v1929
  %v1931 = vand.u32 %v1930, 4294901760
  %1932 = vmatmul.f32.gmra.mxu0 %v1931
  %v1933 = vpop.f32.mrf.mxu0
  %v1934 = vadd.f32 %v1555, %v1933
  %v1935 = vand.u32 %v426, 4294901760
  %v1936 = vsub.f32 %v426, %v1935
  %v1937 = vand.u32 %v1936, 4294901760
  %1938 = vmatmul.f32.gmra.mxu0 %v1937
  %v1939 = vpop.f32.mrf.mxu0
  %v1940 = vadd.f32 %v1560, %v1939
  %v1941 = vand.u32 %v427, 4294901760
  %v1942 = vsub.f32 %v427, %v1941
  %v1943 = vand.u32 %v1942, 4294901760
  %1944 = vmatmul.f32.gmra.mxu0 %v1943
  %v1945 = vpop.f32.mrf.mxu0
  %v1946 = vadd.f32 %v1565, %v1945
  %v1947 = vand.u32 %v428, 4294901760
  %v1948 = vsub.f32 %v428, %v1947
  %v1949 = vand.u32 %v1948, 4294901760
  %1950 = vmatmul.f32.gmra.mxu0 %v1949
  %v1951 = vpop.f32.mrf.mxu0
  %v1952 = vadd.f32 %v1570, %v1951
  %v1953 = vand.u32 %v429, 4294901760
  %v1954 = vsub.f32 %v429, %v1953
  %v1955 = vand.u32 %v1954, 4294901760
  %1956 = vmatmul.f32.gmra.mxu0 %v1955
  %v1957 = vpop.f32.mrf.mxu0
  %v1958 = vadd.f32 %v1575, %v1957
  %v1959 = vand.u32 %v430, 4294901760
  %v1960 = vsub.f32 %v430, %v1959
  %v1961 = vand.u32 %v1960, 4294901760
  %1962 = vmatmul.f32.gmra.mxu0 %v1961
  %v1963 = vpop.f32.mrf.mxu0
  %v1964 = vadd.f32 %v1580, %v1963
  %v1965 = vand.u32 %v431, 4294901760
  %v1966 = vsub.f32 %v431, %v1965
  %v1967 = vand.u32 %v1966, 4294901760
  %1968 = vmatmul.f32.gmra.mxu0 %v1967
  %v1969 = vpop.f32.mrf.mxu0
  %v1970 = vadd.f32 %v1585, %v1969
  %v1971 = vand.u32 %v432, 4294901760
  %v1972 = vsub.f32 %v432, %v1971
  %v1973 = vand.u32 %v1972, 4294901760
  %1974 = vmatmul.f32.gmra.mxu0 %v1973
  %v1975 = vpop.f32.mrf.mxu0
  %v1976 = vadd.f32 %v1590, %v1975
  %v1977 = vand.u32 %v433, 4294901760
  %v1978 = vsub.f32 %v433, %v1977
  %v1979 = vand.u32 %v1978, 4294901760
  %1980 = vmatmul.f32.gmra.mxu0 %v1979
  %v1981 = vpop.f32.mrf.mxu0
  %v1982 = vadd.f32 %v1595, %v1981
  %v1983 = vand.u32 %v434, 4294901760
  %v1984 = vsub.f32 %v434, %v1983
  %v1985 = vand.u32 %v1984, 4294901760
  %1986 = vmatmul.f32.gmra.mxu0 %v1985
  %v1987 = vpop.f32.mrf.mxu0
  %v1988 = vadd.f32 %v1600, %v1987
  %v1989 = vand.u32 %v435, 4294901760
  %v1990 = vsub.f32 %v435, %v1989
  %v1991 = vand.u32 %v1990, 4294901760
  %1992 = vmatmul.f32.gmra.mxu0 %v1991
  %v1993 = vpop.f32.mrf.mxu0
  %v1994 = vadd.f32 %v1605, %v1993
  %v1995 = vand.u32 %v436, 4294901760
  %v1996 = vsub.f32 %v436, %v1995
  %v1997 = vand.u32 %v1996, 4294901760
  %1998 = vmatmul.f32.gmra.mxu0 %v1997
  %v1999 = vpop.f32.mrf.mxu0
  %v2000 = vadd.f32 %v1610, %v1999
  %v2001 = vand.u32 %v437, 4294901760
  %v2002 = vsub.f32 %v437, %v2001
  %v2003 = vand.u32 %v2002, 4294901760
  %2004 = vmatmul.f32.gmra.mxu0 %v2003
  %v2005 = vpop.f32.mrf.mxu0
  %v2006 = vadd.f32 %v1615, %v2005
  %v2007 = vand.u32 %v438, 4294901760
  %v2008 = vsub.f32 %v438, %v2007
  %v2009 = vand.u32 %v2008, 4294901760
  %2010 = vmatmul.f32.gmra.mxu0 %v2009
  %v2011 = vpop.f32.mrf.mxu0
  %v2012 = vadd.f32 %v1620, %v2011
  %v2013 = vand.u32 %v439, 4294901760
  %v2014 = vsub.f32 %v439, %v2013
  %v2015 = vand.u32 %v2014, 4294901760
  %2016 = vmatmul.f32.gmra.mxu0 %v2015
  %v2017 = vpop.f32.mrf.mxu0
  %v2018 = vadd.f32 %v1625, %v2017
  %v2019 = vand.u32 %v440, 4294901760
  %v2020 = vsub.f32 %v440, %v2019
  %v2021 = vand.u32 %v2020, 4294901760
  %2022 = vmatmul.f32.gmra.mxu0 %v2021
  %v2023 = vpop.f32.mrf.mxu0
  %v2024 = vadd.f32 %v1630, %v2023
  %v2025 = vand.u32 %v441, 4294901760
  %v2026 = vsub.f32 %v441, %v2025
  %v2027 = vand.u32 %v2026, 4294901760
  %2028 = vmatmul.f32.gmra.mxu0 %v2027
  %v2029 = vpop.f32.mrf.mxu0
  %v2030 = vadd.f32 %v1635, %v2029
  %v2031 = vand.u32 %v442, 4294901760
  %v2032 = vsub.f32 %v442, %v2031
  %v2033 = vand.u32 %v2032, 4294901760
  %2034 = vmatmul.f32.gmra.mxu0 %v2033
  %v2035 = vpop.f32.mrf.mxu0
  %v2036 = vadd.f32 %v1640, %v2035
  %v2037 = vand.u32 %v443, 4294901760
  %v2038 = vsub.f32 %v443, %v2037
  %v2039 = vand.u32 %v2038, 4294901760
  %2040 = vmatmul.f32.gmra.mxu0 %v2039
  %v2041 = vpop.f32.mrf.mxu0
  %v2042 = vadd.f32 %v1645, %v2041
  %v2043 = vand.u32 %v444, 4294901760
  %v2044 = vsub.f32 %v444, %v2043
  %v2045 = vand.u32 %v2044, 4294901760
  %2046 = vmatmul.f32.gmra.mxu0 %v2045
  %v2047 = vpop.f32.mrf.mxu0
  %v2048 = vadd.f32 %v1650, %v2047
  %v2049 = vand.u32 %v445, 4294901760
  %v2050 = vsub.f32 %v445, %v2049
  %v2051 = vand.u32 %v2050, 4294901760
  %2052 = vmatmul.f32.gmra.mxu0 %v2051
  %v2053 = vpop.f32.mrf.mxu0
  %v2054 = vadd.f32 %v1655, %v2053
  %v2055 = vand.u32 %v446, 4294901760
  %v2056 = vsub.f32 %v446, %v2055
  %v2057 = vand.u32 %v2056, 4294901760
  %2058 = vmatmul.f32.gmra.mxu0 %v2057
  %v2059 = vpop.f32.mrf.mxu0
  %v2060 = vadd.f32 %v1660, %v2059
  %v2061 = vand.u32 %v447, 4294901760
  %v2062 = vsub.f32 %v447, %v2061
  %v2063 = vand.u32 %v2062, 4294901760
  %2064 = vmatmul.f32.gmra.mxu0 %v2063
  %v2065 = vpop.f32.mrf.mxu0
  %v2066 = vadd.f32 %v1665, %v2065
  %v2067 = vand.u32 %v448, 4294901760
  %v2068 = vsub.f32 %v448, %v2067
  %v2069 = vand.u32 %v2068, 4294901760
  %2070 = vmatmul.f32.gmra.mxu0 %v2069
  %v2071 = vpop.f32.mrf.mxu0
  %v2072 = vadd.f32 %v1670, %v2071
  %v2073 = vand.u32 %v449, 4294901760
  %v2074 = vsub.f32 %v449, %v2073
  %v2075 = vand.u32 %v2074, 4294901760
  %2076 = vmatmul.f32.gmra.mxu0 %v2075
  %v2077 = vpop.f32.mrf.mxu0
  %v2078 = vadd.f32 %v1675, %v2077
  %v2079 = vand.u32 %v450, 4294901760
  %v2080 = vsub.f32 %v450, %v2079
  %v2081 = vand.u32 %v2080, 4294901760
  %2082 = vmatmul.f32.gmra.mxu0 %v2081
  %v2083 = vpop.f32.mrf.mxu0
  %v2084 = vadd.f32 %v1680, %v2083
  %v2085 = vand.u32 %v451, 4294901760
  %v2086 = vsub.f32 %v451, %v2085
  %v2087 = vand.u32 %v2086, 4294901760
  %2088 = vmatmul.f32.gmra.mxu0 %v2087
  %v2089 = vpop.f32.mrf.mxu0
  %v2090 = vadd.f32 %v1685, %v2089
  %v2091 = vand.u32 %v452, 4294901760
  %v2092 = vsub.f32 %v452, %v2091
  %v2093 = vand.u32 %v2092, 4294901760
  %2094 = vmatmul.f32.gmra.mxu0 %v2093
  %v2095 = vpop.f32.mrf.mxu0
  %v2096 = vadd.f32 %v1690, %v2095
  %v2097 = vand.u32 %v453, 4294901760
  %v2098 = vsub.f32 %v453, %v2097
  %v2099 = vand.u32 %v2098, 4294901760
  %2100 = vmatmul.f32.gmra.mxu0 %v2099
  %v2101 = vpop.f32.mrf.mxu0
  %v2102 = vadd.f32 %v1695, %v2101
  %v2103 = vand.u32 %v454, 4294901760
  %v2104 = vsub.f32 %v454, %v2103
  %v2105 = vand.u32 %v2104, 4294901760
  %2106 = vmatmul.f32.gmra.mxu0 %v2105
  %v2107 = vpop.f32.mrf.mxu0
  %v2108 = vadd.f32 %v1700, %v2107
  %v2109 = vand.u32 %v455, 4294901760
  %v2110 = vsub.f32 %v455, %v2109
  %v2111 = vand.u32 %v2110, 4294901760
  %2112 = vmatmul.f32.gmra.mxu0 %v2111
  %v2113 = vpop.f32.mrf.mxu0
  %v2114 = vadd.f32 %v1705, %v2113
  %v2115 = vand.u32 %v456, 4294901760
  %v2116 = vsub.f32 %v456, %v2115
  %v2117 = vand.u32 %v2116, 4294901760
  %2118 = vmatmul.f32.gmra.mxu0 %v2117
  %v2119 = vpop.f32.mrf.mxu0
  %v2120 = vadd.f32 %v1710, %v2119
  %v2121 = vand.u32 %v457, 4294901760
  %v2122 = vsub.f32 %v457, %v2121
  %v2123 = vand.u32 %v2122, 4294901760
  %2124 = vmatmul.f32.gmra.mxu0 %v2123
  %v2125 = vpop.f32.mrf.mxu0
  %v2126 = vadd.f32 %v1715, %v2125
  %v2127 = vand.u32 %v458, 4294901760
  %v2128 = vsub.f32 %v458, %v2127
  %v2129 = vand.u32 %v2128, 4294901760
  %2130 = vmatmul.f32.gmra.mxu0 %v2129
  %v2131 = vpop.f32.mrf.mxu0
  %v2132 = vadd.f32 %v1720, %v2131
  %v2133 = vand.u32 %v459, 4294901760
  %v2134 = vsub.f32 %v459, %v2133
  %v2135 = vand.u32 %v2134, 4294901760
  %2136 = vmatmul.f32.gmra.mxu0 %v2135
  %v2137 = vpop.f32.mrf.mxu0
  %v2138 = vadd.f32 %v1725, %v2137
  %v2139 = vand.u32 %v460, 4294901760
  %v2140 = vsub.f32 %v460, %v2139
  %v2141 = vand.u32 %v2140, 4294901760
  %2142 = vmatmul.f32.gmra.mxu0 %v2141
  %v2143 = vpop.f32.mrf.mxu0
  %v2144 = vadd.f32 %v1730, %v2143
  %v2145 = vand.u32 %v461, 4294901760
  %v2146 = vsub.f32 %v461, %v2145
  %v2147 = vand.u32 %v2146, 4294901760
  %2148 = vmatmul.f32.gmra.mxu0 %v2147
  %v2149 = vpop.f32.mrf.mxu0
  %v2150 = vadd.f32 %v1735, %v2149
  %v2151 = vand.u32 %v462, 4294901760
  %v2152 = vsub.f32 %v462, %v2151
  %v2153 = vand.u32 %v2152, 4294901760
  %2154 = vmatmul.f32.gmra.mxu0 %v2153
  %v2155 = vpop.f32.mrf.mxu0
  %v2156 = vadd.f32 %v1740, %v2155
  %v2157 = vand.u32 %v463, 4294901760
  %v2158 = vsub.f32 %v463, %v2157
  %v2159 = vand.u32 %v2158, 4294901760
  %2160 = vmatmul.f32.gmra.mxu0 %v2159
  %v2161 = vpop.f32.mrf.mxu0
  %v2162 = vadd.f32 %v1745, %v2161
  %2163 = vdwg.mxu0
  %v2164 = vand.u32 %v479, 4294901760
  %v2165 = vsub.f32 %v479, %v2164
  %v2166 = vand.u32 %v2165, 4294901760
  %2167 = vmatpush.msra.mxu0 %v2166
  %v2168 = vand.u32 %v478, 4294901760
  %v2169 = vsub.f32 %v478, %v2168
  %v2170 = vand.u32 %v2169, 4294901760
  %2171 = vmatpush.msra.mxu0 %v2170
  %v2172 = vand.u32 %v477, 4294901760
  %v2173 = vsub.f32 %v477, %v2172
  %v2174 = vand.u32 %v2173, 4294901760
  %2175 = vmatpush.msra.mxu0 %v2174
  %v2176 = vand.u32 %v476, 4294901760
  %v2177 = vsub.f32 %v476, %v2176
  %v2178 = vand.u32 %v2177, 4294901760
  %2179 = vmatpush.msra.mxu0 %v2178
  %v2180 = vand.u32 %v475, 4294901760
  %v2181 = vsub.f32 %v475, %v2180
  %v2182 = vand.u32 %v2181, 4294901760
  %2183 = vmatpush.msra.mxu0 %v2182
  %v2184 = vand.u32 %v474, 4294901760
  %v2185 = vsub.f32 %v474, %v2184
  %v2186 = vand.u32 %v2185, 4294901760
  %2187 = vmatpush.msra.mxu0 %v2186
  %v2188 = vand.u32 %v473, 4294901760
  %v2189 = vsub.f32 %v473, %v2188
  %v2190 = vand.u32 %v2189, 4294901760
  %2191 = vmatpush.msra.mxu0 %v2190
  %v2192 = vand.u32 %v472, 4294901760
  %v2193 = vsub.f32 %v472, %v2192
  %v2194 = vand.u32 %v2193, 4294901760
  %2195 = vmatpush.msra.mxu0 %v2194
  %v2196 = vand.u32 %v471, 4294901760
  %v2197 = vsub.f32 %v471, %v2196
  %v2198 = vand.u32 %v2197, 4294901760
  %2199 = vmatpush.msra.mxu0 %v2198
  %v2200 = vand.u32 %v470, 4294901760
  %v2201 = vsub.f32 %v470, %v2200
  %v2202 = vand.u32 %v2201, 4294901760
  %2203 = vmatpush.msra.mxu0 %v2202
  %v2204 = vand.u32 %v469, 4294901760
  %v2205 = vsub.f32 %v469, %v2204
  %v2206 = vand.u32 %v2205, 4294901760
  %2207 = vmatpush.msra.mxu0 %v2206
  %v2208 = vand.u32 %v468, 4294901760
  %v2209 = vsub.f32 %v468, %v2208
  %v2210 = vand.u32 %v2209, 4294901760
  %2211 = vmatpush.msra.mxu0 %v2210
  %v2212 = vand.u32 %v467, 4294901760
  %v2213 = vsub.f32 %v467, %v2212
  %v2214 = vand.u32 %v2213, 4294901760
  %2215 = vmatpush.msra.mxu0 %v2214
  %v2216 = vand.u32 %v466, 4294901760
  %v2217 = vsub.f32 %v466, %v2216
  %v2218 = vand.u32 %v2217, 4294901760
  %2219 = vmatpush.msra.mxu0 %v2218
  %v2220 = vand.u32 %v465, 4294901760
  %v2221 = vsub.f32 %v465, %v2220
  %v2222 = vand.u32 %v2221, 4294901760
  %2223 = vmatpush.msra.mxu0 %v2222
  %v2224 = vand.u32 %v464, 4294901760
  %v2225 = vsub.f32 %v464, %v2224
  %v2226 = vand.u32 %v2225, 4294901760
  %2227 = vmatpush.msra.mxu0 %v2226
  %v2228 = vand.u32 %v400, 4294901760
  %2229 = vmatmul.f32.gmra.mxu0 %v2228
  %v2230 = vpop.f32.mrf.mxu0
  %v2231 = vadd.f32 %v1784, %v2230
  %v2232 = vand.u32 %v401, 4294901760
  %2233 = vmatmul.f32.gmra.mxu0 %v2232
  %v2234 = vpop.f32.mrf.mxu0
  %v2235 = vadd.f32 %v1790, %v2234
  %v2236 = vand.u32 %v402, 4294901760
  %2237 = vmatmul.f32.gmra.mxu0 %v2236
  %v2238 = vpop.f32.mrf.mxu0
  %v2239 = vadd.f32 %v1796, %v2238
  %v2240 = vand.u32 %v403, 4294901760
  %2241 = vmatmul.f32.gmra.mxu0 %v2240
  %v2242 = vpop.f32.mrf.mxu0
  %v2243 = vadd.f32 %v1802, %v2242
  %v2244 = vand.u32 %v404, 4294901760
  %2245 = vmatmul.f32.gmra.mxu0 %v2244
  %v2246 = vpop.f32.mrf.mxu0
  %v2247 = vadd.f32 %v1808, %v2246
  %v2248 = vand.u32 %v405, 4294901760
  %2249 = vmatmul.f32.gmra.mxu0 %v2248
  %v2250 = vpop.f32.mrf.mxu0
  %v2251 = vadd.f32 %v1814, %v2250
  %v2252 = vand.u32 %v406, 4294901760
  %2253 = vmatmul.f32.gmra.mxu0 %v2252
  %v2254 = vpop.f32.mrf.mxu0
  %v2255 = vadd.f32 %v1820, %v2254
  %v2256 = vand.u32 %v407, 4294901760
  %2257 = vmatmul.f32.gmra.mxu0 %v2256
  %v2258 = vpop.f32.mrf.mxu0
  %v2259 = vadd.f32 %v1826, %v2258
  %v2260 = vand.u32 %v408, 4294901760
  %2261 = vmatmul.f32.gmra.mxu0 %v2260
  %v2262 = vpop.f32.mrf.mxu0
  %v2263 = vadd.f32 %v1832, %v2262
  %v2264 = vand.u32 %v409, 4294901760
  %2265 = vmatmul.f32.gmra.mxu0 %v2264
  %v2266 = vpop.f32.mrf.mxu0
  %v2267 = vadd.f32 %v1838, %v2266
  %v2268 = vand.u32 %v410, 4294901760
  %2269 = vmatmul.f32.gmra.mxu0 %v2268
  %v2270 = vpop.f32.mrf.mxu0
  %v2271 = vadd.f32 %v1844, %v2270
  %v2272 = vand.u32 %v411, 4294901760
  %2273 = vmatmul.f32.gmra.mxu0 %v2272
  %v2274 = vpop.f32.mrf.mxu0
  %v2275 = vadd.f32 %v1850, %v2274
  %v2276 = vand.u32 %v412, 4294901760
  %2277 = vmatmul.f32.gmra.mxu0 %v2276
  %v2278 = vpop.f32.mrf.mxu0
  %v2279 = vadd.f32 %v1856, %v2278
  %v2280 = vand.u32 %v413, 4294901760
  %2281 = vmatmul.f32.gmra.mxu0 %v2280
  %v2282 = vpop.f32.mrf.mxu0
  %v2283 = vadd.f32 %v1862, %v2282
  %v2284 = vand.u32 %v414, 4294901760
  %2285 = vmatmul.f32.gmra.mxu0 %v2284
  %v2286 = vpop.f32.mrf.mxu0
  %v2287 = vadd.f32 %v1868, %v2286
  %v2288 = vand.u32 %v415, 4294901760
  %2289 = vmatmul.f32.gmra.mxu0 %v2288
  %v2290 = vpop.f32.mrf.mxu0
  %v2291 = vadd.f32 %v1874, %v2290
  %v2292 = vand.u32 %v416, 4294901760
  %2293 = vmatmul.f32.gmra.mxu0 %v2292
  %v2294 = vpop.f32.mrf.mxu0
  %v2295 = vadd.f32 %v1880, %v2294
  %v2296 = vand.u32 %v417, 4294901760
  %2297 = vmatmul.f32.gmra.mxu0 %v2296
  %v2298 = vpop.f32.mrf.mxu0
  %v2299 = vadd.f32 %v1886, %v2298
  %v2300 = vand.u32 %v418, 4294901760
  %2301 = vmatmul.f32.gmra.mxu0 %v2300
  %v2302 = vpop.f32.mrf.mxu0
  %v2303 = vadd.f32 %v1892, %v2302
  %v2304 = vand.u32 %v419, 4294901760
  %2305 = vmatmul.f32.gmra.mxu0 %v2304
  %v2306 = vpop.f32.mrf.mxu0
  %v2307 = vadd.f32 %v1898, %v2306
  %v2308 = vand.u32 %v420, 4294901760
  %2309 = vmatmul.f32.gmra.mxu0 %v2308
  %v2310 = vpop.f32.mrf.mxu0
  %v2311 = vadd.f32 %v1904, %v2310
  %v2312 = vand.u32 %v421, 4294901760
  %2313 = vmatmul.f32.gmra.mxu0 %v2312
  %v2314 = vpop.f32.mrf.mxu0
  %v2315 = vadd.f32 %v1910, %v2314
  %v2316 = vand.u32 %v422, 4294901760
  %2317 = vmatmul.f32.gmra.mxu0 %v2316
  %v2318 = vpop.f32.mrf.mxu0
  %v2319 = vadd.f32 %v1916, %v2318
  %v2320 = vand.u32 %v423, 4294901760
  %2321 = vmatmul.f32.gmra.mxu0 %v2320
  %v2322 = vpop.f32.mrf.mxu0
  %v2323 = vadd.f32 %v1922, %v2322
  %v2324 = vand.u32 %v424, 4294901760
  %2325 = vmatmul.f32.gmra.mxu0 %v2324
  %v2326 = vpop.f32.mrf.mxu0
  %v2327 = vadd.f32 %v1928, %v2326
  %v2328 = vand.u32 %v425, 4294901760
  %2329 = vmatmul.f32.gmra.mxu0 %v2328
  %v2330 = vpop.f32.mrf.mxu0
  %v2331 = vadd.f32 %v1934, %v2330
  %v2332 = vand.u32 %v426, 4294901760
  %2333 = vmatmul.f32.gmra.mxu0 %v2332
  %v2334 = vpop.f32.mrf.mxu0
  %v2335 = vadd.f32 %v1940, %v2334
  %v2336 = vand.u32 %v427, 4294901760
  %2337 = vmatmul.f32.gmra.mxu0 %v2336
  %v2338 = vpop.f32.mrf.mxu0
  %v2339 = vadd.f32 %v1946, %v2338
  %v2340 = vand.u32 %v428, 4294901760
  %2341 = vmatmul.f32.gmra.mxu0 %v2340
  %v2342 = vpop.f32.mrf.mxu0
  %v2343 = vadd.f32 %v1952, %v2342
  %v2344 = vand.u32 %v429, 4294901760
  %2345 = vmatmul.f32.gmra.mxu0 %v2344
  %v2346 = vpop.f32.mrf.mxu0
  %v2347 = vadd.f32 %v1958, %v2346
  %v2348 = vand.u32 %v430, 4294901760
  %2349 = vmatmul.f32.gmra.mxu0 %v2348
  %v2350 = vpop.f32.mrf.mxu0
  %v2351 = vadd.f32 %v1964, %v2350
  %v2352 = vand.u32 %v431, 4294901760
  %2353 = vmatmul.f32.gmra.mxu0 %v2352
  %v2354 = vpop.f32.mrf.mxu0
  %v2355 = vadd.f32 %v1970, %v2354
  %v2356 = vand.u32 %v432, 4294901760
  %2357 = vmatmul.f32.gmra.mxu0 %v2356
  %v2358 = vpop.f32.mrf.mxu0
  %v2359 = vadd.f32 %v1976, %v2358
  %v2360 = vand.u32 %v433, 4294901760
  %2361 = vmatmul.f32.gmra.mxu0 %v2360
  %v2362 = vpop.f32.mrf.mxu0
  %v2363 = vadd.f32 %v1982, %v2362
  %v2364 = vand.u32 %v434, 4294901760
  %2365 = vmatmul.f32.gmra.mxu0 %v2364
  %v2366 = vpop.f32.mrf.mxu0
  %v2367 = vadd.f32 %v1988, %v2366
  %v2368 = vand.u32 %v435, 4294901760
  %2369 = vmatmul.f32.gmra.mxu0 %v2368
  %v2370 = vpop.f32.mrf.mxu0
  %v2371 = vadd.f32 %v1994, %v2370
  %v2372 = vand.u32 %v436, 4294901760
  %2373 = vmatmul.f32.gmra.mxu0 %v2372
  %v2374 = vpop.f32.mrf.mxu0
  %v2375 = vadd.f32 %v2000, %v2374
  %v2376 = vand.u32 %v437, 4294901760
  %2377 = vmatmul.f32.gmra.mxu0 %v2376
  %v2378 = vpop.f32.mrf.mxu0
  %v2379 = vadd.f32 %v2006, %v2378
  %v2380 = vand.u32 %v438, 4294901760
  %2381 = vmatmul.f32.gmra.mxu0 %v2380
  %v2382 = vpop.f32.mrf.mxu0
  %v2383 = vadd.f32 %v2012, %v2382
  %v2384 = vand.u32 %v439, 4294901760
  %2385 = vmatmul.f32.gmra.mxu0 %v2384
  %v2386 = vpop.f32.mrf.mxu0
  %v2387 = vadd.f32 %v2018, %v2386
  %v2388 = vand.u32 %v440, 4294901760
  %2389 = vmatmul.f32.gmra.mxu0 %v2388
  %v2390 = vpop.f32.mrf.mxu0
  %v2391 = vadd.f32 %v2024, %v2390
  %v2392 = vand.u32 %v441, 4294901760
  %2393 = vmatmul.f32.gmra.mxu0 %v2392
  %v2394 = vpop.f32.mrf.mxu0
  %v2395 = vadd.f32 %v2030, %v2394
  %v2396 = vand.u32 %v442, 4294901760
  %2397 = vmatmul.f32.gmra.mxu0 %v2396
  %v2398 = vpop.f32.mrf.mxu0
  %v2399 = vadd.f32 %v2036, %v2398
  %v2400 = vand.u32 %v443, 4294901760
  %2401 = vmatmul.f32.gmra.mxu0 %v2400
  %v2402 = vpop.f32.mrf.mxu0
  %v2403 = vadd.f32 %v2042, %v2402
  %v2404 = vand.u32 %v444, 4294901760
  %2405 = vmatmul.f32.gmra.mxu0 %v2404
  %v2406 = vpop.f32.mrf.mxu0
  %v2407 = vadd.f32 %v2048, %v2406
  %v2408 = vand.u32 %v445, 4294901760
  %2409 = vmatmul.f32.gmra.mxu0 %v2408
  %v2410 = vpop.f32.mrf.mxu0
  %v2411 = vadd.f32 %v2054, %v2410
  %v2412 = vand.u32 %v446, 4294901760
  %2413 = vmatmul.f32.gmra.mxu0 %v2412
  %v2414 = vpop.f32.mrf.mxu0
  %v2415 = vadd.f32 %v2060, %v2414
  %v2416 = vand.u32 %v447, 4294901760
  %2417 = vmatmul.f32.gmra.mxu0 %v2416
  %v2418 = vpop.f32.mrf.mxu0
  %v2419 = vadd.f32 %v2066, %v2418
  %v2420 = vand.u32 %v448, 4294901760
  %2421 = vmatmul.f32.gmra.mxu0 %v2420
  %v2422 = vpop.f32.mrf.mxu0
  %v2423 = vadd.f32 %v2072, %v2422
  %v2424 = vand.u32 %v449, 4294901760
  %2425 = vmatmul.f32.gmra.mxu0 %v2424
  %v2426 = vpop.f32.mrf.mxu0
  %v2427 = vadd.f32 %v2078, %v2426
  %v2428 = vand.u32 %v450, 4294901760
  %2429 = vmatmul.f32.gmra.mxu0 %v2428
  %v2430 = vpop.f32.mrf.mxu0
  %v2431 = vadd.f32 %v2084, %v2430
  %v2432 = vand.u32 %v451, 4294901760
  %2433 = vmatmul.f32.gmra.mxu0 %v2432
  %v2434 = vpop.f32.mrf.mxu0
  %v2435 = vadd.f32 %v2090, %v2434
  %v2436 = vand.u32 %v452, 4294901760
  %2437 = vmatmul.f32.gmra.mxu0 %v2436
  %v2438 = vpop.f32.mrf.mxu0
  %v2439 = vadd.f32 %v2096, %v2438
  %v2440 = vand.u32 %v453, 4294901760
  %2441 = vmatmul.f32.gmra.mxu0 %v2440
  %v2442 = vpop.f32.mrf.mxu0
  %v2443 = vadd.f32 %v2102, %v2442
  %v2444 = vand.u32 %v454, 4294901760
  %2445 = vmatmul.f32.gmra.mxu0 %v2444
  %v2446 = vpop.f32.mrf.mxu0
  %v2447 = vadd.f32 %v2108, %v2446
  %v2448 = vand.u32 %v455, 4294901760
  %2449 = vmatmul.f32.gmra.mxu0 %v2448
  %v2450 = vpop.f32.mrf.mxu0
  %v2451 = vadd.f32 %v2114, %v2450
  %v2452 = vand.u32 %v456, 4294901760
  %2453 = vmatmul.f32.gmra.mxu0 %v2452
  %v2454 = vpop.f32.mrf.mxu0
  %v2455 = vadd.f32 %v2120, %v2454
  %v2456 = vand.u32 %v457, 4294901760
  %2457 = vmatmul.f32.gmra.mxu0 %v2456
  %v2458 = vpop.f32.mrf.mxu0
  %v2459 = vadd.f32 %v2126, %v2458
  %v2460 = vand.u32 %v458, 4294901760
  %2461 = vmatmul.f32.gmra.mxu0 %v2460
  %v2462 = vpop.f32.mrf.mxu0
  %v2463 = vadd.f32 %v2132, %v2462
  %v2464 = vand.u32 %v459, 4294901760
  %2465 = vmatmul.f32.gmra.mxu0 %v2464
  %v2466 = vpop.f32.mrf.mxu0
  %v2467 = vadd.f32 %v2138, %v2466
  %v2468 = vand.u32 %v460, 4294901760
  %2469 = vmatmul.f32.gmra.mxu0 %v2468
  %v2470 = vpop.f32.mrf.mxu0
  %v2471 = vadd.f32 %v2144, %v2470
  %v2472 = vand.u32 %v461, 4294901760
  %2473 = vmatmul.f32.gmra.mxu0 %v2472
  %v2474 = vpop.f32.mrf.mxu0
  %v2475 = vadd.f32 %v2150, %v2474
  %v2476 = vand.u32 %v462, 4294901760
  %2477 = vmatmul.f32.gmra.mxu0 %v2476
  %v2478 = vpop.f32.mrf.mxu0
  %v2479 = vadd.f32 %v2156, %v2478
  %v2480 = vand.u32 %v463, 4294901760
  %2481 = vmatmul.f32.gmra.mxu0 %v2480
  %v2482 = vpop.f32.mrf.mxu0
  %v2483 = vadd.f32 %v2162, %v2482
  %2484 = vdwg.mxu0
  %v2485 = vand.u32 %v479, 4294901760
  %2486 = vmatpush.msra.mxu0 %v2485
  %v2487 = vand.u32 %v478, 4294901760
  %2488 = vmatpush.msra.mxu0 %v2487
  %v2489 = vand.u32 %v477, 4294901760
  %2490 = vmatpush.msra.mxu0 %v2489
  %v2491 = vand.u32 %v476, 4294901760
  %2492 = vmatpush.msra.mxu0 %v2491
  %v2493 = vand.u32 %v475, 4294901760
  %2494 = vmatpush.msra.mxu0 %v2493
  %v2495 = vand.u32 %v474, 4294901760
  %2496 = vmatpush.msra.mxu0 %v2495
  %v2497 = vand.u32 %v473, 4294901760
  %2498 = vmatpush.msra.mxu0 %v2497
  %v2499 = vand.u32 %v472, 4294901760
  %2500 = vmatpush.msra.mxu0 %v2499
  %v2501 = vand.u32 %v471, 4294901760
  %2502 = vmatpush.msra.mxu0 %v2501
  %v2503 = vand.u32 %v470, 4294901760
  %2504 = vmatpush.msra.mxu0 %v2503
  %v2505 = vand.u32 %v469, 4294901760
  %2506 = vmatpush.msra.mxu0 %v2505
  %v2507 = vand.u32 %v468, 4294901760
  %2508 = vmatpush.msra.mxu0 %v2507
  %v2509 = vand.u32 %v467, 4294901760
  %2510 = vmatpush.msra.mxu0 %v2509
  %v2511 = vand.u32 %v466, 4294901760
  %2512 = vmatpush.msra.mxu0 %v2511
  %v2513 = vand.u32 %v465, 4294901760
  %2514 = vmatpush.msra.mxu0 %v2513
  %v2515 = vand.u32 %v464, 4294901760
  %2516 = vmatpush.msra.mxu0 %v2515
  %v2517 = vand.u32 %v400, 4294901760
  %2518 = vmatmul.f32.gmra.mxu0 %v2517
  %v2519 = vpop.f32.mrf.mxu0
  %v2520 = vadd.f32 %v2231, %v2519
  %v2521 = vand.u32 %v401, 4294901760
  %2522 = vmatmul.f32.gmra.mxu0 %v2521
  %v2523 = vpop.f32.mrf.mxu0
  %v2524 = vadd.f32 %v2235, %v2523
  %v2525 = vand.u32 %v402, 4294901760
  %2526 = vmatmul.f32.gmra.mxu0 %v2525
  %v2527 = vpop.f32.mrf.mxu0
  %v2528 = vadd.f32 %v2239, %v2527
  %v2529 = vand.u32 %v403, 4294901760
  %2530 = vmatmul.f32.gmra.mxu0 %v2529
  %v2531 = vpop.f32.mrf.mxu0
  %v2532 = vadd.f32 %v2243, %v2531
  %v2533 = vand.u32 %v404, 4294901760
  %2534 = vmatmul.f32.gmra.mxu0 %v2533
  %v2535 = vpop.f32.mrf.mxu0
  %v2536 = vadd.f32 %v2247, %v2535
  %v2537 = vand.u32 %v405, 4294901760
  %2538 = vmatmul.f32.gmra.mxu0 %v2537
  %v2539 = vpop.f32.mrf.mxu0
  %v2540 = vadd.f32 %v2251, %v2539
  %v2541 = vand.u32 %v406, 4294901760
  %2542 = vmatmul.f32.gmra.mxu0 %v2541
  %v2543 = vpop.f32.mrf.mxu0
  %v2544 = vadd.f32 %v2255, %v2543
  %v2545 = vand.u32 %v407, 4294901760
  %2546 = vmatmul.f32.gmra.mxu0 %v2545
  %v2547 = vpop.f32.mrf.mxu0
  %v2548 = vadd.f32 %v2259, %v2547
  %v2549 = vand.u32 %v408, 4294901760
  %2550 = vmatmul.f32.gmra.mxu0 %v2549
  %v2551 = vpop.f32.mrf.mxu0
  %v2552 = vadd.f32 %v2263, %v2551
  %v2553 = vand.u32 %v409, 4294901760
  %2554 = vmatmul.f32.gmra.mxu0 %v2553
  %v2555 = vpop.f32.mrf.mxu0
  %v2556 = vadd.f32 %v2267, %v2555
  %v2557 = vand.u32 %v410, 4294901760
  %2558 = vmatmul.f32.gmra.mxu0 %v2557
  %v2559 = vpop.f32.mrf.mxu0
  %v2560 = vadd.f32 %v2271, %v2559
  %v2561 = vand.u32 %v411, 4294901760
  %2562 = vmatmul.f32.gmra.mxu0 %v2561
  %v2563 = vpop.f32.mrf.mxu0
  %v2564 = vadd.f32 %v2275, %v2563
  %v2565 = vand.u32 %v412, 4294901760
  %2566 = vmatmul.f32.gmra.mxu0 %v2565
  %v2567 = vpop.f32.mrf.mxu0
  %v2568 = vadd.f32 %v2279, %v2567
  %v2569 = vand.u32 %v413, 4294901760
  %2570 = vmatmul.f32.gmra.mxu0 %v2569
  %v2571 = vpop.f32.mrf.mxu0
  %v2572 = vadd.f32 %v2283, %v2571
  %v2573 = vand.u32 %v414, 4294901760
  %2574 = vmatmul.f32.gmra.mxu0 %v2573
  %v2575 = vpop.f32.mrf.mxu0
  %v2576 = vadd.f32 %v2287, %v2575
  %v2577 = vand.u32 %v415, 4294901760
  %2578 = vmatmul.f32.gmra.mxu0 %v2577
  %v2579 = vpop.f32.mrf.mxu0
  %v2580 = vadd.f32 %v2291, %v2579
  %v2581 = vand.u32 %v416, 4294901760
  %2582 = vmatmul.f32.gmra.mxu0 %v2581
  %v2583 = vpop.f32.mrf.mxu0
  %v2584 = vadd.f32 %v2295, %v2583
  %v2585 = vand.u32 %v417, 4294901760
  %2586 = vmatmul.f32.gmra.mxu0 %v2585
  %v2587 = vpop.f32.mrf.mxu0
  %v2588 = vadd.f32 %v2299, %v2587
  %v2589 = vand.u32 %v418, 4294901760
  %2590 = vmatmul.f32.gmra.mxu0 %v2589
  %v2591 = vpop.f32.mrf.mxu0
  %v2592 = vadd.f32 %v2303, %v2591
  %v2593 = vand.u32 %v419, 4294901760
  %2594 = vmatmul.f32.gmra.mxu0 %v2593
  %v2595 = vpop.f32.mrf.mxu0
  %v2596 = vadd.f32 %v2307, %v2595
  %v2597 = vand.u32 %v420, 4294901760
  %2598 = vmatmul.f32.gmra.mxu0 %v2597
  %v2599 = vpop.f32.mrf.mxu0
  %v2600 = vadd.f32 %v2311, %v2599
  %v2601 = vand.u32 %v421, 4294901760
  %2602 = vmatmul.f32.gmra.mxu0 %v2601
  %v2603 = vpop.f32.mrf.mxu0
  %v2604 = vadd.f32 %v2315, %v2603
  %v2605 = vand.u32 %v422, 4294901760
  %2606 = vmatmul.f32.gmra.mxu0 %v2605
  %v2607 = vpop.f32.mrf.mxu0
  %v2608 = vadd.f32 %v2319, %v2607
  %v2609 = vand.u32 %v423, 4294901760
  %2610 = vmatmul.f32.gmra.mxu0 %v2609
  %v2611 = vpop.f32.mrf.mxu0
  %v2612 = vadd.f32 %v2323, %v2611
  %v2613 = vand.u32 %v424, 4294901760
  %2614 = vmatmul.f32.gmra.mxu0 %v2613
  %v2615 = vpop.f32.mrf.mxu0
  %v2616 = vadd.f32 %v2327, %v2615
  %v2617 = vand.u32 %v425, 4294901760
  %2618 = vmatmul.f32.gmra.mxu0 %v2617
  %v2619 = vpop.f32.mrf.mxu0
  %v2620 = vadd.f32 %v2331, %v2619
  %v2621 = vand.u32 %v426, 4294901760
  %2622 = vmatmul.f32.gmra.mxu0 %v2621
  %v2623 = vpop.f32.mrf.mxu0
  %v2624 = vadd.f32 %v2335, %v2623
  %v2625 = vand.u32 %v427, 4294901760
  %2626 = vmatmul.f32.gmra.mxu0 %v2625
  %v2627 = vpop.f32.mrf.mxu0
  %v2628 = vadd.f32 %v2339, %v2627
  %v2629 = vand.u32 %v428, 4294901760
  %2630 = vmatmul.f32.gmra.mxu0 %v2629
  %v2631 = vpop.f32.mrf.mxu0
  %v2632 = vadd.f32 %v2343, %v2631
  %v2633 = vand.u32 %v429, 4294901760
  %2634 = vmatmul.f32.gmra.mxu0 %v2633
  %v2635 = vpop.f32.mrf.mxu0
  %v2636 = vadd.f32 %v2347, %v2635
  %v2637 = vand.u32 %v430, 4294901760
  %2638 = vmatmul.f32.gmra.mxu0 %v2637
  %v2639 = vpop.f32.mrf.mxu0
  %v2640 = vadd.f32 %v2351, %v2639
  %v2641 = vand.u32 %v431, 4294901760
  %2642 = vmatmul.f32.gmra.mxu0 %v2641
  %v2643 = vpop.f32.mrf.mxu0
  %v2644 = vadd.f32 %v2355, %v2643
  %v2645 = vand.u32 %v432, 4294901760
  %2646 = vmatmul.f32.gmra.mxu0 %v2645
  %v2647 = vpop.f32.mrf.mxu0
  %v2648 = vadd.f32 %v2359, %v2647
  %v2649 = vand.u32 %v433, 4294901760
  %2650 = vmatmul.f32.gmra.mxu0 %v2649
  %v2651 = vpop.f32.mrf.mxu0
  %v2652 = vadd.f32 %v2363, %v2651
  %v2653 = vand.u32 %v434, 4294901760
  %2654 = vmatmul.f32.gmra.mxu0 %v2653
  %v2655 = vpop.f32.mrf.mxu0
  %v2656 = vadd.f32 %v2367, %v2655
  %v2657 = vand.u32 %v435, 4294901760
  %2658 = vmatmul.f32.gmra.mxu0 %v2657
  %v2659 = vpop.f32.mrf.mxu0
  %v2660 = vadd.f32 %v2371, %v2659
  %v2661 = vand.u32 %v436, 4294901760
  %2662 = vmatmul.f32.gmra.mxu0 %v2661
  %v2663 = vpop.f32.mrf.mxu0
  %v2664 = vadd.f32 %v2375, %v2663
  %v2665 = vand.u32 %v437, 4294901760
  %2666 = vmatmul.f32.gmra.mxu0 %v2665
  %v2667 = vpop.f32.mrf.mxu0
  %v2668 = vadd.f32 %v2379, %v2667
  %v2669 = vand.u32 %v438, 4294901760
  %2670 = vmatmul.f32.gmra.mxu0 %v2669
  %v2671 = vpop.f32.mrf.mxu0
  %v2672 = vadd.f32 %v2383, %v2671
  %v2673 = vand.u32 %v439, 4294901760
  %2674 = vmatmul.f32.gmra.mxu0 %v2673
  %v2675 = vpop.f32.mrf.mxu0
  %v2676 = vadd.f32 %v2387, %v2675
  %v2677 = vand.u32 %v440, 4294901760
  %2678 = vmatmul.f32.gmra.mxu0 %v2677
  %v2679 = vpop.f32.mrf.mxu0
  %v2680 = vadd.f32 %v2391, %v2679
  %v2681 = vand.u32 %v441, 4294901760
  %2682 = vmatmul.f32.gmra.mxu0 %v2681
  %v2683 = vpop.f32.mrf.mxu0
  %v2684 = vadd.f32 %v2395, %v2683
  %v2685 = vand.u32 %v442, 4294901760
  %2686 = vmatmul.f32.gmra.mxu0 %v2685
  %v2687 = vpop.f32.mrf.mxu0
  %v2688 = vadd.f32 %v2399, %v2687
  %v2689 = vand.u32 %v443, 4294901760
  %2690 = vmatmul.f32.gmra.mxu0 %v2689
  %v2691 = vpop.f32.mrf.mxu0
  %v2692 = vadd.f32 %v2403, %v2691
  %v2693 = vand.u32 %v444, 4294901760
  %2694 = vmatmul.f32.gmra.mxu0 %v2693
  %v2695 = vpop.f32.mrf.mxu0
  %v2696 = vadd.f32 %v2407, %v2695
  %v2697 = vand.u32 %v445, 4294901760
  %2698 = vmatmul.f32.gmra.mxu0 %v2697
  %v2699 = vpop.f32.mrf.mxu0
  %v2700 = vadd.f32 %v2411, %v2699
  %v2701 = vand.u32 %v446, 4294901760
  %2702 = vmatmul.f32.gmra.mxu0 %v2701
  %v2703 = vpop.f32.mrf.mxu0
  %v2704 = vadd.f32 %v2415, %v2703
  %v2705 = vand.u32 %v447, 4294901760
  %2706 = vmatmul.f32.gmra.mxu0 %v2705
  %v2707 = vpop.f32.mrf.mxu0
  %v2708 = vadd.f32 %v2419, %v2707
  %v2709 = vand.u32 %v448, 4294901760
  %2710 = vmatmul.f32.gmra.mxu0 %v2709
  %v2711 = vpop.f32.mrf.mxu0
  %v2712 = vadd.f32 %v2423, %v2711
  %v2713 = vand.u32 %v449, 4294901760
  %2714 = vmatmul.f32.gmra.mxu0 %v2713
  %v2715 = vpop.f32.mrf.mxu0
  %v2716 = vadd.f32 %v2427, %v2715
  %v2717 = vand.u32 %v450, 4294901760
  %2718 = vmatmul.f32.gmra.mxu0 %v2717
  %v2719 = vpop.f32.mrf.mxu0
  %v2720 = vadd.f32 %v2431, %v2719
  %v2721 = vand.u32 %v451, 4294901760
  %2722 = vmatmul.f32.gmra.mxu0 %v2721
  %v2723 = vpop.f32.mrf.mxu0
  %v2724 = vadd.f32 %v2435, %v2723
  %v2725 = vand.u32 %v452, 4294901760
  %2726 = vmatmul.f32.gmra.mxu0 %v2725
  %v2727 = vpop.f32.mrf.mxu0
  %v2728 = vadd.f32 %v2439, %v2727
  %v2729 = vand.u32 %v453, 4294901760
  %2730 = vmatmul.f32.gmra.mxu0 %v2729
  %v2731 = vpop.f32.mrf.mxu0
  %v2732 = vadd.f32 %v2443, %v2731
  %v2733 = vand.u32 %v454, 4294901760
  %2734 = vmatmul.f32.gmra.mxu0 %v2733
  %v2735 = vpop.f32.mrf.mxu0
  %v2736 = vadd.f32 %v2447, %v2735
  %v2737 = vand.u32 %v455, 4294901760
  %2738 = vmatmul.f32.gmra.mxu0 %v2737
  %v2739 = vpop.f32.mrf.mxu0
  %v2740 = vadd.f32 %v2451, %v2739
  %v2741 = vand.u32 %v456, 4294901760
  %2742 = vmatmul.f32.gmra.mxu0 %v2741
  %v2743 = vpop.f32.mrf.mxu0
  %v2744 = vadd.f32 %v2455, %v2743
  %v2745 = vand.u32 %v457, 4294901760
  %2746 = vmatmul.f32.gmra.mxu0 %v2745
  %v2747 = vpop.f32.mrf.mxu0
  %v2748 = vadd.f32 %v2459, %v2747
  %v2749 = vand.u32 %v458, 4294901760
  %2750 = vmatmul.f32.gmra.mxu0 %v2749
  %v2751 = vpop.f32.mrf.mxu0
  %v2752 = vadd.f32 %v2463, %v2751
  %v2753 = vand.u32 %v459, 4294901760
  %2754 = vmatmul.f32.gmra.mxu0 %v2753
  %v2755 = vpop.f32.mrf.mxu0
  %v2756 = vadd.f32 %v2467, %v2755
  %v2757 = vand.u32 %v460, 4294901760
  %2758 = vmatmul.f32.gmra.mxu0 %v2757
  %v2759 = vpop.f32.mrf.mxu0
  %v2760 = vadd.f32 %v2471, %v2759
  %v2761 = vand.u32 %v461, 4294901760
  %2762 = vmatmul.f32.gmra.mxu0 %v2761
  %v2763 = vpop.f32.mrf.mxu0
  %v2764 = vadd.f32 %v2475, %v2763
  %v2765 = vand.u32 %v462, 4294901760
  %2766 = vmatmul.f32.gmra.mxu0 %v2765
  %v2767 = vpop.f32.mrf.mxu0
  %v2768 = vadd.f32 %v2479, %v2767
  %v2769 = vand.u32 %v463, 4294901760
  %2770 = vmatmul.f32.gmra.mxu0 %v2769
  %v2771 = vpop.f32.mrf.mxu0
  %v2772 = vadd.f32 %v2483, %v2771
  %2773 = vdwg.mxu0
  %vm2774 = vcmask 64512
  %2775 = vst.msk [vmem:[%s3] sm:$0xff] %vm2774, %v2520
  %2776 = vst.msk [vmem:[%s3 + $0x8] sm:$0xff] %vm2774, %v2524
  %2777 = vst.msk [vmem:[%s3 + $0x10] sm:$0xff] %vm2774, %v2528
  %2778 = vst.msk [vmem:[%s3 + $0x18] sm:$0xff] %vm2774, %v2532
  %2779 = vst.msk [vmem:[%s3 + $0x20] sm:$0xff] %vm2774, %v2536
  %2780 = vst.msk [vmem:[%s3 + $0x28] sm:$0xff] %vm2774, %v2540
  %2781 = vst.msk [vmem:[%s3 + $0x30] sm:$0xff] %vm2774, %v2544
  %2782 = vst.msk [vmem:[%s3 + $0x38] sm:$0xff] %vm2774, %v2548
  %2783 = vst.msk [vmem:[%s3 + $0x40] sm:$0xff] %vm2774, %v2552
  %2784 = vst.msk [vmem:[%s3 + $0x48] sm:$0xff] %vm2774, %v2556
  %2785 = vst.msk [vmem:[%s3 + $0x50] sm:$0xff] %vm2774, %v2560
  %2786 = vst.msk [vmem:[%s3 + $0x58] sm:$0xff] %vm2774, %v2564
  %2787 = vst.msk [vmem:[%s3 + $0x60] sm:$0xff] %vm2774, %v2568
  %2788 = vst.msk [vmem:[%s3 + $0x68] sm:$0xff] %vm2774, %v2572
  %2789 = vst.msk [vmem:[%s3 + $0x70] sm:$0xff] %vm2774, %v2576
  %2790 = vst.msk [vmem:[%s3 + $0x78] sm:$0xff] %vm2774, %v2580
  %2791 = vst.msk [vmem:[%s3 + $0x80] sm:$0xff] %vm2774, %v2584
  %2792 = vst.msk [vmem:[%s3 + $0x88] sm:$0xff] %vm2774, %v2588
  %2793 = vst.msk [vmem:[%s3 + $0x90] sm:$0xff] %vm2774, %v2592
  %2794 = vst.msk [vmem:[%s3 + $0x98] sm:$0xff] %vm2774, %v2596
  %2795 = vst.msk [vmem:[%s3 + $0xa0] sm:$0xff] %vm2774, %v2600
  %2796 = vst.msk [vmem:[%s3 + $0xa8] sm:$0xff] %vm2774, %v2604
  %2797 = vst.msk [vmem:[%s3 + $0xb0] sm:$0xff] %vm2774, %v2608
  %2798 = vst.msk [vmem:[%s3 + $0xb8] sm:$0xff] %vm2774, %v2612
  %2799 = vst.msk [vmem:[%s3 + $0xc0] sm:$0xff] %vm2774, %v2616
  %2800 = vst.msk [vmem:[%s3 + $0xc8] sm:$0xff] %vm2774, %v2620
  %2801 = vst.msk [vmem:[%s3 + $0xd0] sm:$0xff] %vm2774, %v2624
  %2802 = vst.msk [vmem:[%s3 + $0xd8] sm:$0xff] %vm2774, %v2628
  %2803 = vst.msk [vmem:[%s3 + $0xe0] sm:$0xff] %vm2774, %v2632
  %2804 = vst.msk [vmem:[%s3 + $0xe8] sm:$0xff] %vm2774, %v2636
  %2805 = vst.msk [vmem:[%s3 + $0xf0] sm:$0xff] %vm2774, %v2640
  %2806 = vst.msk [vmem:[%s3 + $0xf8] sm:$0xff] %vm2774, %v2644
  %2807 = vst.msk [vmem:[%s3 + $0x100] sm:$0xff] %vm2774, %v2648
  %2808 = vst.msk [vmem:[%s3 + $0x108] sm:$0xff] %vm2774, %v2652
  %2809 = vst.msk [vmem:[%s3 + $0x110] sm:$0xff] %vm2774, %v2656
  %2810 = vst.msk [vmem:[%s3 + $0x118] sm:$0xff] %vm2774, %v2660
  %2811 = vst.msk [vmem:[%s3 + $0x120] sm:$0xff] %vm2774, %v2664
  %2812 = vst.msk [vmem:[%s3 + $0x128] sm:$0xff] %vm2774, %v2668
  %2813 = vst.msk [vmem:[%s3 + $0x130] sm:$0xff] %vm2774, %v2672
  %2814 = vst.msk [vmem:[%s3 + $0x138] sm:$0xff] %vm2774, %v2676
  %2815 = vst.msk [vmem:[%s3 + $0x140] sm:$0xff] %vm2774, %v2680
  %2816 = vst.msk [vmem:[%s3 + $0x148] sm:$0xff] %vm2774, %v2684
  %2817 = vst.msk [vmem:[%s3 + $0x150] sm:$0xff] %vm2774, %v2688
  %2818 = vst.msk [vmem:[%s3 + $0x158] sm:$0xff] %vm2774, %v2692
  %2819 = vst.msk [vmem:[%s3 + $0x160] sm:$0xff] %vm2774, %v2696
  %2820 = vst.msk [vmem:[%s3 + $0x168] sm:$0xff] %vm2774, %v2700
  %2821 = vst.msk [vmem:[%s3 + $0x170] sm:$0xff] %vm2774, %v2704
  %2822 = vst.msk [vmem:[%s3 + $0x178] sm:$0xff] %vm2774, %v2708
  %2823 = vst.msk [vmem:[%s3 + $0x180] sm:$0xff] %vm2774, %v2712
  %2824 = vst.msk [vmem:[%s3 + $0x188] sm:$0xff] %vm2774, %v2716
  %2825 = vst.msk [vmem:[%s3 + $0x190] sm:$0xff] %vm2774, %v2720
  %2826 = vst.msk [vmem:[%s3 + $0x198] sm:$0xff] %vm2774, %v2724
  %2827 = vst.msk [vmem:[%s3 + $0x1a0] sm:$0xff] %vm2774, %v2728
  %2828 = vst.msk [vmem:[%s3 + $0x1a8] sm:$0xff] %vm2774, %v2732
  %2829 = vst.msk [vmem:[%s3 + $0x1b0] sm:$0xff] %vm2774, %v2736
  %2830 = vst.msk [vmem:[%s3 + $0x1b8] sm:$0xff] %vm2774, %v2740
  %2831 = vst.msk [vmem:[%s3 + $0x1c0] sm:$0xff] %vm2774, %v2744
  %2832 = vst.msk [vmem:[%s3 + $0x1c8] sm:$0xff] %vm2774, %v2748
  %2833 = vst.msk [vmem:[%s3 + $0x1d0] sm:$0xff] %vm2774, %v2752
  %2834 = vst.msk [vmem:[%s3 + $0x1d8] sm:$0xff] %vm2774, %v2756
  %2835 = vst.msk [vmem:[%s3 + $0x1e0] sm:$0xff] %vm2774, %v2760
  %2836 = vst.msk [vmem:[%s3 + $0x1e8] sm:$0xff] %vm2774, %v2764
  %2837 = vst.msk [vmem:[%s3 + $0x1f0] sm:$0xff] %vm2774, %v2768
  %2838 = vst.msk [vmem:[%s3 + $0x1f8] sm:$0xff] %vm2774, %v2772
  // Predicated region
  $region14: #{tpu_custom_call.1} parent=0 // pred_check
    _
  $region15: #{tpu_custom_call.1} parent=0 // pred_check_branch
    %2840 = sbr.rel (0) target = $region17
  $region16: #{tpu_custom_call.1} parent=0 // pred_region
    _
  $region17: #{tpu_custom_call.1} parent=0 // pred_fallthru
    _
  // Predicated region
  $region18: #{tpu_custom_call.1} parent=0 // pred_check
    _
  $region19: #{tpu_custom_call.1} parent=0 // pred_check_branch
    %2842 = sbr.rel (0) target = $region21
  $region20: #{tpu_custom_call.1} parent=0 // pred_region
    _
  $region21: #{tpu_custom_call.1} parent=0 // pred_fallthru
    _

</llo_original>
